<compile_context>
chip_gen: v5e
topology: v5e:2x2
jax: 0.10.0
libtpu: 0.0.40
codegen_flags: <defaults>
</compile_context>

<pallas_src>
import jax
import jax.numpy as jnp
import numpy as np
from jax import lax
from jax.experimental import pallas as pl
from jax.experimental.pallas import tpu as pltpu

# ---- small, module-consistent dims -----------------------------------------
T = 8        # sequence length
B = 8        # batch size
E = 32       # d_input_size (embedding dim)
H = 32       # hidden_size
P = 64       # project1 output
C = 3        # project2 output (NLI classes)
VOCAB = 100  # synthetic vocabulary
VPAD = 128   # vocab rows padded to a lane block for the one-hot gather
G = 128      # per-gate lane-padded width (vreg lane block)


# ---- Pallas kernel: in-kernel gather + stacked GRU recurrence + MLP head ----
def nli_kernel(tok_ref, lens_ref, xtab_ref, whh_ref, bhn_ref,
               w1_ref, b1_ref, w2_ref, b2_ref, out_ref, xg_ref):
    # tok_ref:  (T*2B, 1)   int32 stacked token ids (per step: src rows, tgt rows)
    # lens_ref: (2B, 1)     int32 lengths (src rows first, then tgt rows)
    # xtab_ref: (VPAD, 3G)  fused  emb @ W_ih_all + (b_ir+b_hr | b_iz+b_hz | b_in)
    # whh_ref:  (H, 3G)     packed hidden weights, K dimension NOT padded
    # bhn_ref:  (1, G)      b_hn padded to a lane block
    # xg_ref:   (T*2B, 3G)  VMEM scratch for the gathered per-token gate inputs

    # One-hot matmul gather (single MXU pass, off the serial chain).
    tok = tok_ref[...]                                                # (T*2B, 1)
    iota = lax.broadcasted_iota(jnp.int32, (T * 2 * B, VPAD), 1)
    onehot = (iota == tok).astype(jnp.float32)                        # (T*2B, VPAD)
    xg_ref[...] = jnp.dot(onehot, xtab_ref[...],
                          preferred_element_type=jnp.float32)         # (T*2B, 3G)

    # Hoisted loop invariants (JAX does not CSE broadcast_in_dim).
    whh = whh_ref[...]                                                # (H, 3G)
    lens_bc = jnp.broadcast_to(lens_ref[...], (2 * B, G))             # (2B, G)
    bhn_bc = jnp.broadcast_to(bhn_ref[...], (2 * B, G))               # (2B, G)

    # Stacked src/tgt GRU recurrence, fully unrolled (static slices throughout).
    h = jnp.zeros((2 * B, G), dtype=jnp.float32)
    for t in range(T):
        xg = xg_ref[t * 2 * B:(t + 1) * 2 * B, :]                     # (2B, 3G)
        # Single per-step MXU op with an unpadded K=32 weight stream.
        hh = jnp.dot(h[:, :H], whh, preferred_element_type=jnp.float32)
        # r and z gates together on one 256-lane slab.
        rz = jax.nn.sigmoid(xg[:, :2 * G] + hh[:, :2 * G])            # (2B, 2G)
        r = rz[:, :G]
        z = rz[:, G:]
        n = jnp.tanh(xg[:, 2 * G:] + r * (hh[:, 2 * G:] + bhn_bc))    # (2B, G)
        h_new = n + z * (h - n)                                       # == (1-z)*n + z*h
        # packed-sequence semantics: row i frozen once t >= lens[i]
        h = jnp.where(t < lens_bc, h_new, h)

    # Head: project1(cat([h_src, h_tgt], -1)) as two unpadded (H,P) matmuls.
    hid = jnp.tanh(
        jnp.dot(h[:B, :H], w1_ref[0], preferred_element_type=jnp.float32)
        + jnp.dot(h[B:, :H], w1_ref[1], preferred_element_type=jnp.float32)
        + b1_ref[...])
    out_ref[...] = (jnp.dot(hid, w2_ref[...], preferred_element_type=jnp.float32)
                    + b2_ref[...])


# ---- one-time parameter packing (host side) ---------------------------------
def pack_params(params):
    w_ih, w_hh = params["w_ih"], params["w_hh"]     # (3, E, H), (3, H, H)
    b_ih, b_hh = params["b_ih"], params["b_hh"]     # (3, 1, H), (3, 1, H)

    # Input-side packed projection; each gate occupies lanes [gG, gG+H).
    w_ih_all = jnp.zeros((E, 3 * G), jnp.float32)
    for g in range(3):
        w_ih_all = w_ih_all.at[:, g * G: g * G + H].set(w_ih[g])

    # Pre-summed biases: r/z hidden biases fold into the input side; n keeps
    # only its input bias here (b_hn stays inside r*(.) in the kernel).
    b_x_all = jnp.zeros((1, 3 * G), jnp.float32)
    b_x_all = b_x_all.at[:, 0:H].set(b_ih[0] + b_hh[0])
    b_x_all = b_x_all.at[:, G:G + H].set(b_ih[1] + b_hh[1])
    b_x_all = b_x_all.at[:, 2 * G:2 * G + H].set(b_ih[2])

    # Fused per-token lookup table (embedding gather + input gate projection),
    # rows padded to VPAD for the in-kernel one-hot gather.
    x_table = jnp.zeros((VPAD, 3 * G), jnp.float32)
    x_table = x_table.at[:VOCAB].set(
        params["embedding"].astype(jnp.float32) @ w_ih_all + b_x_all)

    # Hidden-side packed weights — contraction dimension kept at H (no K padding).
    w_hh_all = jnp.zeros((H, 3 * G), jnp.float32)
    for g in range(3):
        w_hh_all = w_hh_all.at[:, g * G: g * G + H].set(w_hh[g])

    b_hn = jnp.zeros((1, G), jnp.float32).at[:, :H].set(b_hh[2])

    return {
        "x_table": x_table,
        "w_hh": w_hh_all,
        "b_hn": b_hn,
        "w1": params["w1"].astype(jnp.float32),     # (2, H, P) — unpadded
        "b1": params["b1"].astype(jnp.float32),
        "w2": params["w2"].astype(jnp.float32),
        "b2": params["b2"].astype(jnp.float32),
    }


# ---- wrapper ----------------------------------------------------------------
@jax.jit
def nli_forward(src_tok, src_len, tgt_tok, tgt_len, packed):
    # Only tiny integer plumbing happens outside the kernel; the gather and the
    # whole recurrence live inside the single pallas_call.
    tokens = jnp.concatenate([src_tok, tgt_tok], axis=1)              # (T, 2B)
    tokens = tokens.reshape(T * 2 * B, 1).astype(jnp.int32)
    lens = jnp.concatenate([src_len, tgt_len], axis=0).reshape(2 * B, 1).astype(jnp.int32)

    vmem = pl.BlockSpec(memory_space=pltpu.MemorySpace.VMEM)
    args = (tokens, lens, packed["x_table"], packed["w_hh"], packed["b_hn"],
            packed["w1"], packed["b1"], packed["w2"], packed["b2"])

    return pl.pallas_call(
        nli_kernel,
        out_shape=jax.ShapeDtypeStruct((B, C), jnp.float32),
        in_specs=[vmem] * len(args),
        out_specs=vmem,
        scratch_shapes=[pltpu.VMEM((T * 2 * B, 3 * G), jnp.float32)],
    )(*args)


# ---- pure-JAX reference (unpacked weights, for a sanity check) ---------------
def nli_reference(src_tok, src_len, tgt_tok, tgt_len, params):
    emb_table = params["embedding"]
    w_ih, w_hh = params["w_ih"], params["w_hh"]
    b_ih, b_hh = params["b_ih"], params["b_hh"]

    def gru(tok, lens):
        x_seq = jnp.take(emb_table, tok, axis=0)
        h = jnp.zeros((B, H), jnp.float32)
        lens = lens.reshape(B, 1)
        for t in range(T):
            x = x_seq[t]
            r = jax.nn.sigmoid(x @ w_ih[0] + b_ih[0] + h @ w_hh[0] + b_hh[0])
            z = jax.nn.sigmoid(x @ w_ih[1] + b_ih[1] + h @ w_hh[1] + b_hh[1])
            n = jnp.tanh(x @ w_ih[2] + b_ih[2] + r * (h @ w_hh[2] + b_hh[2]))
            h_new = (1.0 - z) * n + z * h
            h = jnp.where(t < lens, h_new, h)
        return h

    h_src = gru(src_tok, src_len)
    h_tgt = gru(tgt_tok, tgt_len)
    hid = jnp.tanh(h_src @ params["w1"][0] + h_tgt @ params["w1"][1] + params["b1"])
    return hid @ params["w2"] + params["b2"]


# ---- main --------------------------------------------------------------------
if __name__ == "__main__":
    key = jax.random.PRNGKey(0)
    ks = jax.random.split(key, 12)

    def init(k, shape, scale=0.1):
        return (scale * jax.random.normal(k, shape)).astype(jnp.float32)

    params = {
        "embedding": init(ks[0], (VOCAB, E)),
        # ref_rnn GRU params, gate order (r, z, n), pre-transposed to (in, out)
        "w_ih": init(ks[1], (3, E, H)),
        "w_hh": init(ks[2], (3, H, H)),
        "b_ih": init(ks[3], (3, 1, H)),
        "b_hh": init(ks[4], (3, 1, H)),
        # project1: Linear(2H -> 64) split into the h_src / h_tgt halves
        "w1": init(ks[5], (2, H, P)),
        "b1": init(ks[6], (1, P)),
        # project2: Linear(64 -> 3)
        "w2": init(ks[7], (P, C)),
        "b2": init(ks[8], (1, C)),
    }

    src_tok = jax.random.randint(ks[9], (T, B), 0, VOCAB, dtype=jnp.int32)
    tgt_tok = jax.random.randint(ks[10], (T, B), 0, VOCAB, dtype=jnp.int32)
    lens_key_a, lens_key_b = jax.random.split(ks[11])
    src_len = jax.random.randint(lens_key_a, (B,), 3, T + 1, dtype=jnp.int32)
    tgt_len = jax.random.randint(lens_key_b, (B,), 3, T + 1, dtype=jnp.int32)

    packed = pack_params(params)                       # one-time host prep
    packed = jax.tree_util.tree_map(jax.block_until_ready, packed)

    logits = nli_forward(src_tok, src_len, tgt_tok, tgt_len, packed)
    logits = jax.block_until_ready(logits)

    ref = jax.block_until_ready(
        nli_reference(src_tok, src_len, tgt_tok, tgt_len, params))
    np.testing.assert_allclose(np.asarray(logits), np.asarray(ref),
                               rtol=1e-3, atol=1e-3)

    print("KERNEL_OK")
</pallas_src>

<mosaic_0001>
module attributes {stable_mosaic.version = 11 : i64} {
  func.func @nli_kernel(%arg0: memref<128x1xi32, #tpu.memory_space<vmem>>, %arg1: memref<16x1xi32, #tpu.memory_space<vmem>>, %arg2: memref<128x384xf32, #tpu.memory_space<vmem>>, %arg3: memref<32x384xf32, #tpu.memory_space<vmem>>, %arg4: memref<1x128xf32, #tpu.memory_space<vmem>>, %arg5: memref<2x32x64xf32, #tpu.memory_space<vmem>>, %arg6: memref<1x64xf32, #tpu.memory_space<vmem>>, %arg7: memref<64x3xf32, #tpu.memory_space<vmem>>, %arg8: memref<1x3xf32, #tpu.memory_space<vmem>>, %arg9: memref<8x3xf32, #tpu.memory_space<vmem>>, %arg10: memref<128x384xf32, #tpu.memory_space<vmem>>) attributes {dimension_semantics = [], scalar_prefetch = 0 : i64, scratch_operands = 1 : i64, tpu.core_type = #tpu.core_type<tc>} {
    %c0 = arith.constant 0 : index
    %c0_0 = arith.constant 0 : index
    %0 = vector.load %arg0[%c0, %c0_0] : memref<128x1xi32, #tpu.memory_space<vmem>>, vector<128x1xi32>
    %1 = tpu.iota {dimensions = array<i32: 1>} : vector<128x128xi32>
    %2 = vector.broadcast %0 : vector<128x1xi32> to vector<128x128xi32>
    %3 = arith.cmpi eq, %1, %2 : vector<128x128xi32>
    %4 = arith.extui %3 : vector<128x128xi1> to vector<128x128xi32>
    %5 = arith.sitofp %4 : vector<128x128xi32> to vector<128x128xf32>
    %c0_1 = arith.constant 0 : index
    %c0_2 = arith.constant 0 : index
    %6 = vector.load %arg2[%c0_1, %c0_2] : memref<128x384xf32, #tpu.memory_space<vmem>>, vector<128x384xf32>
    %cst = arith.constant dense<0.000000e+00> : vector<128x384xf32>
    %7 = tpu.matmul %5, %6, %cst {dimension_numbers = #tpu.dot_dimension_numbers<[1], [0], [0], [1], [0, 0, 1, 1], [], []>} : vector<128x128xf32>, vector<128x384xf32>, vector<128x384xf32> -> vector<128x384xf32>
    %c0_3 = arith.constant 0 : index
    %c0_4 = arith.constant 0 : index
    %8 = vector.load %arg10[%c0_3, %c0_4] : memref<128x384xf32, #tpu.memory_space<vmem>>, vector<128x384xf32>
    tpu.vector_store %arg10[%c0_3, %c0_4], %7 {strides = array<i32>} : memref<128x384xf32, #tpu.memory_space<vmem>>, vector<128x384xf32>,
    %c0_5 = arith.constant 0 : index
    %c0_6 = arith.constant 0 : index
    %9 = vector.load %arg3[%c0_5, %c0_6] : memref<32x384xf32, #tpu.memory_space<vmem>>, vector<32x384xf32>
    %c0_7 = arith.constant 0 : index
    %c0_8 = arith.constant 0 : index
    %10 = vector.load %arg1[%c0_7, %c0_8] : memref<16x1xi32, #tpu.memory_space<vmem>>, vector<16x1xi32>
    %11 = vector.shape_cast %10 : vector<16x1xi32> to vector<16x1xi32>
    %12 = vector.broadcast %11 : vector<16x1xi32> to vector<16x128xi32>
    %c0_9 = arith.constant 0 : index
    %c0_10 = arith.constant 0 : index
    %13 = vector.load %arg4[%c0_9, %c0_10] : memref<1x128xf32, #tpu.memory_space<vmem>>, vector<1x128xf32>
    %14 = vector.shape_cast %13 : vector<1x128xf32> to vector<1x128xf32>
    %15 = vector.broadcast %14 : vector<1x128xf32> to vector<16x128xf32>
    %cst_11 = arith.constant 0.000000e+00 : f32
    %16 = vector.broadcast %cst_11 : f32 to vector<16x128xf32>
    %c0_12 = arith.constant 0 : index
    %c0_13 = arith.constant 0 : index
    %17 = vector.load %arg10[%c0_12, %c0_13] : memref<128x384xf32, #tpu.memory_space<vmem>>, vector<16x384xf32>
    %18 = vector.extract_strided_slice %16 {offsets = [0, 0], sizes = [16, 32], strides = [1, 1]} : vector<16x128xf32> to vector<16x32xf32>
    %cst_14 = arith.constant dense<0.000000e+00> : vector<16x384xf32>
    %19 = tpu.matmul %18, %9, %cst_14 {dimension_numbers = #tpu.dot_dimension_numbers<[1], [0], [0], [1], [0, 0, 1, 1], [], []>} : vector<16x32xf32>, vector<32x384xf32>, vector<16x384xf32> -> vector<16x384xf32>
    %20 = vector.extract_strided_slice %17 {offsets = [0, 0], sizes = [16, 256], strides = [1, 1]} : vector<16x384xf32> to vector<16x256xf32>
    %21 = vector.extract_strided_slice %19 {offsets = [0, 0], sizes = [16, 256], strides = [1, 1]} : vector<16x384xf32> to vector<16x256xf32>
    %22 = arith.addf %20, %21 : vector<16x256xf32>
    %23 = arith.negf %22 : vector<16x256xf32>
    %24 = math.exp %23 : vector<16x256xf32>
    %cst_15 = arith.constant 1.000000e+00 : f32
    %25 = vector.broadcast %cst_15 : f32 to vector<16x256xf32>
    %26 = arith.addf %25, %24 : vector<16x256xf32>
    %27 = arith.divf %25, %26 : vector<16x256xf32>
    %28 = vector.extract_strided_slice %27 {offsets = [0, 0], sizes = [16, 128], strides = [1, 1]} : vector<16x256xf32> to vector<16x128xf32>
    %29 = vector.extract_strided_slice %27 {offsets = [0, 128], sizes = [16, 128], strides = [1, 1]} : vector<16x256xf32> to vector<16x128xf32>
    %30 = vector.extract_strided_slice %17 {offsets = [0, 256], sizes = [16, 128], strides = [1, 1]} : vector<16x384xf32> to vector<16x128xf32>
    %31 = vector.extract_strided_slice %19 {offsets = [0, 256], sizes = [16, 128], strides = [1, 1]} : vector<16x384xf32> to vector<16x128xf32>
    %32 = arith.addf %31, %15 : vector<16x128xf32>
    %33 = arith.mulf %28, %32 : vector<16x128xf32>
    %34 = arith.addf %30, %33 : vector<16x128xf32>
    %35 = math.tanh %34 : vector<16x128xf32>
    %36 = arith.subf %16, %35 : vector<16x128xf32>
    %37 = arith.mulf %29, %36 : vector<16x128xf32>
    %38 = arith.addf %35, %37 : vector<16x128xf32>
    %c0_i32 = arith.constant 0 : i32
    %39 = vector.broadcast %c0_i32 : i32 to vector<16x128xi32>
    %40 = arith.cmpi sgt, %12, %39 : vector<16x128xi32>
    %41 = arith.select %40, %38, %16 : vector<16x128xi1>, vector<16x128xf32>
    %c16 = arith.constant 16 : index
    %c0_16 = arith.constant 0 : index
    %42 = vector.load %arg10[%c16, %c0_16] : memref<128x384xf32, #tpu.memory_space<vmem>>, vector<16x384xf32>
    %43 = vector.extract_strided_slice %41 {offsets = [0, 0], sizes = [16, 32], strides = [1, 1]} : vector<16x128xf32> to vector<16x32xf32>
    %cst_17 = arith.constant dense<0.000000e+00> : vector<16x384xf32>
    %44 = tpu.matmul %43, %9, %cst_17 {dimension_numbers = #tpu.dot_dimension_numbers<[1], [0], [0], [1], [0, 0, 1, 1], [], []>} : vector<16x32xf32>, vector<32x384xf32>, vector<16x384xf32> -> vector<16x384xf32>
    %45 = vector.extract_strided_slice %42 {offsets = [0, 0], sizes = [16, 256], strides = [1, 1]} : vector<16x384xf32> to vector<16x256xf32>
    %46 = vector.extract_strided_slice %44 {offsets = [0, 0], sizes = [16, 256], strides = [1, 1]} : vector<16x384xf32> to vector<16x256xf32>
    %47 = arith.addf %45, %46 : vector<16x256xf32>
    %48 = arith.negf %47 : vector<16x256xf32>
    %49 = math.exp %48 : vector<16x256xf32>
    %cst_18 = arith.constant 1.000000e+00 : f32
    %50 = vector.broadcast %cst_18 : f32 to vector<16x256xf32>
    %51 = arith.addf %50, %49 : vector<16x256xf32>
    %52 = arith.divf %50, %51 : vector<16x256xf32>
    %53 = vector.extract_strided_slice %52 {offsets = [0, 0], sizes = [16, 128], strides = [1, 1]} : vector<16x256xf32> to vector<16x128xf32>
    %54 = vector.extract_strided_slice %52 {offsets = [0, 128], sizes = [16, 128], strides = [1, 1]} : vector<16x256xf32> to vector<16x128xf32>
    %55 = vector.extract_strided_slice %42 {offsets = [0, 256], sizes = [16, 128], strides = [1, 1]} : vector<16x384xf32> to vector<16x128xf32>
    %56 = vector.extract_strided_slice %44 {offsets = [0, 256], sizes = [16, 128], strides = [1, 1]} : vector<16x384xf32> to vector<16x128xf32>
    %57 = arith.addf %56, %15 : vector<16x128xf32>
    %58 = arith.mulf %53, %57 : vector<16x128xf32>
    %59 = arith.addf %55, %58 : vector<16x128xf32>
    %60 = math.tanh %59 : vector<16x128xf32>
    %61 = arith.subf %41, %60 : vector<16x128xf32>
    %62 = arith.mulf %54, %61 : vector<16x128xf32>
    %63 = arith.addf %60, %62 : vector<16x128xf32>
    %c1_i32 = arith.constant 1 : i32
    %64 = vector.broadcast %c1_i32 : i32 to vector<16x128xi32>
    %65 = arith.cmpi sgt, %12, %64 : vector<16x128xi32>
    %66 = arith.select %65, %63, %41 : vector<16x128xi1>, vector<16x128xf32>
    %c32 = arith.constant 32 : index
    %c0_19 = arith.constant 0 : index
    %67 = vector.load %arg10[%c32, %c0_19] : memref<128x384xf32, #tpu.memory_space<vmem>>, vector<16x384xf32>
    %68 = vector.extract_strided_slice %66 {offsets = [0, 0], sizes = [16, 32], strides = [1, 1]} : vector<16x128xf32> to vector<16x32xf32>
    %cst_20 = arith.constant dense<0.000000e+00> : vector<16x384xf32>
    %69 = tpu.matmul %68, %9, %cst_20 {dimension_numbers = #tpu.dot_dimension_numbers<[1], [0], [0], [1], [0, 0, 1, 1], [], []>} : vector<16x32xf32>, vector<32x384xf32>, vector<16x384xf32> -> vector<16x384xf32>
    %70 = vector.extract_strided_slice %67 {offsets = [0, 0], sizes = [16, 256], strides = [1, 1]} : vector<16x384xf32> to vector<16x256xf32>
    %71 = vector.extract_strided_slice %69 {offsets = [0, 0], sizes = [16, 256], strides = [1, 1]} : vector<16x384xf32> to vector<16x256xf32>
    %72 = arith.addf %70, %71 : vector<16x256xf32>
    %73 = arith.negf %72 : vector<16x256xf32>
    %74 = math.exp %73 : vector<16x256xf32>
    %cst_21 = arith.constant 1.000000e+00 : f32
    %75 = vector.broadcast %cst_21 : f32 to vector<16x256xf32>
    %76 = arith.addf %75, %74 : vector<16x256xf32>
    %77 = arith.divf %75, %76 : vector<16x256xf32>
    %78 = vector.extract_strided_slice %77 {offsets = [0, 0], sizes = [16, 128], strides = [1, 1]} : vector<16x256xf32> to vector<16x128xf32>
    %79 = vector.extract_strided_slice %77 {offsets = [0, 128], sizes = [16, 128], strides = [1, 1]} : vector<16x256xf32> to vector<16x128xf32>
    %80 = vector.extract_strided_slice %67 {offsets = [0, 256], sizes = [16, 128], strides = [1, 1]} : vector<16x384xf32> to vector<16x128xf32>
    %81 = vector.extract_strided_slice %69 {offsets = [0, 256], sizes = [16, 128], strides = [1, 1]} : vector<16x384xf32> to vector<16x128xf32>
    %82 = arith.addf %81, %15 : vector<16x128xf32>
    %83 = arith.mulf %78, %82 : vector<16x128xf32>
    %84 = arith.addf %80, %83 : vector<16x128xf32>
    %85 = math.tanh %84 : vector<16x128xf32>
    %86 = arith.subf %66, %85 : vector<16x128xf32>
    %87 = arith.mulf %79, %86 : vector<16x128xf32>
    %88 = arith.addf %85, %87 : vector<16x128xf32>
    %c2_i32 = arith.constant 2 : i32
    %89 = vector.broadcast %c2_i32 : i32 to vector<16x128xi32>
    %90 = arith.cmpi sgt, %12, %89 : vector<16x128xi32>
    %91 = arith.select %90, %88, %66 : vector<16x128xi1>, vector<16x128xf32>
    %c48 = arith.constant 48 : index
    %c0_22 = arith.constant 0 : index
    %92 = vector.load %arg10[%c48, %c0_22] : memref<128x384xf32, #tpu.memory_space<vmem>>, vector<16x384xf32>
    %93 = vector.extract_strided_slice %91 {offsets = [0, 0], sizes = [16, 32], strides = [1, 1]} : vector<16x128xf32> to vector<16x32xf32>
    %cst_23 = arith.constant dense<0.000000e+00> : vector<16x384xf32>
    %94 = tpu.matmul %93, %9, %cst_23 {dimension_numbers = #tpu.dot_dimension_numbers<[1], [0], [0], [1], [0, 0, 1, 1], [], []>} : vector<16x32xf32>, vector<32x384xf32>, vector<16x384xf32> -> vector<16x384xf32>
    %95 = vector.extract_strided_slice %92 {offsets = [0, 0], sizes = [16, 256], strides = [1, 1]} : vector<16x384xf32> to vector<16x256xf32>
    %96 = vector.extract_strided_slice %94 {offsets = [0, 0], sizes = [16, 256], strides = [1, 1]} : vector<16x384xf32> to vector<16x256xf32>
    %97 = arith.addf %95, %96 : vector<16x256xf32>
    %98 = arith.negf %97 : vector<16x256xf32>
    %99 = math.exp %98 : vector<16x256xf32>
    %cst_24 = arith.constant 1.000000e+00 : f32
    %100 = vector.broadcast %cst_24 : f32 to vector<16x256xf32>
    %101 = arith.addf %100, %99 : vector<16x256xf32>
    %102 = arith.divf %100, %101 : vector<16x256xf32>
    %103 = vector.extract_strided_slice %102 {offsets = [0, 0], sizes = [16, 128], strides = [1, 1]} : vector<16x256xf32> to vector<16x128xf32>
    %104 = vector.extract_strided_slice %102 {offsets = [0, 128], sizes = [16, 128], strides = [1, 1]} : vector<16x256xf32> to vector<16x128xf32>
    %105 = vector.extract_strided_slice %92 {offsets = [0, 256], sizes = [16, 128], strides = [1, 1]} : vector<16x384xf32> to vector<16x128xf32>
    %106 = vector.extract_strided_slice %94 {offsets = [0, 256], sizes = [16, 128], strides = [1, 1]} : vector<16x384xf32> to vector<16x128xf32>
    %107 = arith.addf %106, %15 : vector<16x128xf32>
    %108 = arith.mulf %103, %107 : vector<16x128xf32>
    %109 = arith.addf %105, %108 : vector<16x128xf32>
    %110 = math.tanh %109 : vector<16x128xf32>
    %111 = arith.subf %91, %110 : vector<16x128xf32>
    %112 = arith.mulf %104, %111 : vector<16x128xf32>
    %113 = arith.addf %110, %112 : vector<16x128xf32>
    %c3_i32 = arith.constant 3 : i32
    %114 = vector.broadcast %c3_i32 : i32 to vector<16x128xi32>
    %115 = arith.cmpi sgt, %12, %114 : vector<16x128xi32>
    %116 = arith.select %115, %113, %91 : vector<16x128xi1>, vector<16x128xf32>
    %c64 = arith.constant 64 : index
    %c0_25 = arith.constant 0 : index
    %117 = vector.load %arg10[%c64, %c0_25] : memref<128x384xf32, #tpu.memory_space<vmem>>, vector<16x384xf32>
    %118 = vector.extract_strided_slice %116 {offsets = [0, 0], sizes = [16, 32], strides = [1, 1]} : vector<16x128xf32> to vector<16x32xf32>
    %cst_26 = arith.constant dense<0.000000e+00> : vector<16x384xf32>
    %119 = tpu.matmul %118, %9, %cst_26 {dimension_numbers = #tpu.dot_dimension_numbers<[1], [0], [0], [1], [0, 0, 1, 1], [], []>} : vector<16x32xf32>, vector<32x384xf32>, vector<16x384xf32> -> vector<16x384xf32>
    %120 = vector.extract_strided_slice %117 {offsets = [0, 0], sizes = [16, 256], strides = [1, 1]} : vector<16x384xf32> to vector<16x256xf32>
    %121 = vector.extract_strided_slice %119 {offsets = [0, 0], sizes = [16, 256], strides = [1, 1]} : vector<16x384xf32> to vector<16x256xf32>
    %122 = arith.addf %120, %121 : vector<16x256xf32>
    %123 = arith.negf %122 : vector<16x256xf32>
    %124 = math.exp %123 : vector<16x256xf32>
    %cst_27 = arith.constant 1.000000e+00 : f32
    %125 = vector.broadcast %cst_27 : f32 to vector<16x256xf32>
    %126 = arith.addf %125, %124 : vector<16x256xf32>
    %127 = arith.divf %125, %126 : vector<16x256xf32>
    %128 = vector.extract_strided_slice %127 {offsets = [0, 0], sizes = [16, 128], strides = [1, 1]} : vector<16x256xf32> to vector<16x128xf32>
    %129 = vector.extract_strided_slice %127 {offsets = [0, 128], sizes = [16, 128], strides = [1, 1]} : vector<16x256xf32> to vector<16x128xf32>
    %130 = vector.extract_strided_slice %117 {offsets = [0, 256], sizes = [16, 128], strides = [1, 1]} : vector<16x384xf32> to vector<16x128xf32>
    %131 = vector.extract_strided_slice %119 {offsets = [0, 256], sizes = [16, 128], strides = [1, 1]} : vector<16x384xf32> to vector<16x128xf32>
    %132 = arith.addf %131, %15 : vector<16x128xf32>
    %133 = arith.mulf %128, %132 : vector<16x128xf32>
    %134 = arith.addf %130, %133 : vector<16x128xf32>
    %135 = math.tanh %134 : vector<16x128xf32>
    %136 = arith.subf %116, %135 : vector<16x128xf32>
    %137 = arith.mulf %129, %136 : vector<16x128xf32>
    %138 = arith.addf %135, %137 : vector<16x128xf32>
    %c4_i32 = arith.constant 4 : i32
    %139 = vector.broadcast %c4_i32 : i32 to vector<16x128xi32>
    %140 = arith.cmpi sgt, %12, %139 : vector<16x128xi32>
    %141 = arith.select %140, %138, %116 : vector<16x128xi1>, vector<16x128xf32>
    %c80 = arith.constant 80 : index
    %c0_28 = arith.constant 0 : index
    %142 = vector.load %arg10[%c80, %c0_28] : memref<128x384xf32, #tpu.memory_space<vmem>>, vector<16x384xf32>
    %143 = vector.extract_strided_slice %141 {offsets = [0, 0], sizes = [16, 32], strides = [1, 1]} : vector<16x128xf32> to vector<16x32xf32>
    %cst_29 = arith.constant dense<0.000000e+00> : vector<16x384xf32>
    %144 = tpu.matmul %143, %9, %cst_29 {dimension_numbers = #tpu.dot_dimension_numbers<[1], [0], [0], [1], [0, 0, 1, 1], [], []>} : vector<16x32xf32>, vector<32x384xf32>, vector<16x384xf32> -> vector<16x384xf32>
    %145 = vector.extract_strided_slice %142 {offsets = [0, 0], sizes = [16, 256], strides = [1, 1]} : vector<16x384xf32> to vector<16x256xf32>
    %146 = vector.extract_strided_slice %144 {offsets = [0, 0], sizes = [16, 256], strides = [1, 1]} : vector<16x384xf32> to vector<16x256xf32>
    %147 = arith.addf %145, %146 : vector<16x256xf32>
    %148 = arith.negf %147 : vector<16x256xf32>
    %149 = math.exp %148 : vector<16x256xf32>
    %cst_30 = arith.constant 1.000000e+00 : f32
    %150 = vector.broadcast %cst_30 : f32 to vector<16x256xf32>
    %151 = arith.addf %150, %149 : vector<16x256xf32>
    %152 = arith.divf %150, %151 : vector<16x256xf32>
    %153 = vector.extract_strided_slice %152 {offsets = [0, 0], sizes = [16, 128], strides = [1, 1]} : vector<16x256xf32> to vector<16x128xf32>
    %154 = vector.extract_strided_slice %152 {offsets = [0, 128], sizes = [16, 128], strides = [1, 1]} : vector<16x256xf32> to vector<16x128xf32>
    %155 = vector.extract_strided_slice %142 {offsets = [0, 256], sizes = [16, 128], strides = [1, 1]} : vector<16x384xf32> to vector<16x128xf32>
    %156 = vector.extract_strided_slice %144 {offsets = [0, 256], sizes = [16, 128], strides = [1, 1]} : vector<16x384xf32> to vector<16x128xf32>
    %157 = arith.addf %156, %15 : vector<16x128xf32>
    %158 = arith.mulf %153, %157 : vector<16x128xf32>
    %159 = arith.addf %155, %158 : vector<16x128xf32>
    %160 = math.tanh %159 : vector<16x128xf32>
    %161 = arith.subf %141, %160 : vector<16x128xf32>
    %162 = arith.mulf %154, %161 : vector<16x128xf32>
    %163 = arith.addf %160, %162 : vector<16x128xf32>
    %c5_i32 = arith.constant 5 : i32
    %164 = vector.broadcast %c5_i32 : i32 to vector<16x128xi32>
    %165 = arith.cmpi sgt, %12, %164 : vector<16x128xi32>
    %166 = arith.select %165, %163, %141 : vector<16x128xi1>, vector<16x128xf32>
    %c96 = arith.constant 96 : index
    %c0_31 = arith.constant 0 : index
    %167 = vector.load %arg10[%c96, %c0_31] : memref<128x384xf32, #tpu.memory_space<vmem>>, vector<16x384xf32>
    %168 = vector.extract_strided_slice %166 {offsets = [0, 0], sizes = [16, 32], strides = [1, 1]} : vector<16x128xf32> to vector<16x32xf32>
    %cst_32 = arith.constant dense<0.000000e+00> : vector<16x384xf32>
    %169 = tpu.matmul %168, %9, %cst_32 {dimension_numbers = #tpu.dot_dimension_numbers<[1], [0], [0], [1], [0, 0, 1, 1], [], []>} : vector<16x32xf32>, vector<32x384xf32>, vector<16x384xf32> -> vector<16x384xf32>
    %170 = vector.extract_strided_slice %167 {offsets = [0, 0], sizes = [16, 256], strides = [1, 1]} : vector<16x384xf32> to vector<16x256xf32>
    %171 = vector.extract_strided_slice %169 {offsets = [0, 0], sizes = [16, 256], strides = [1, 1]} : vector<16x384xf32> to vector<16x256xf32>
    %172 = arith.addf %170, %171 : vector<16x256xf32>
    %173 = arith.negf %172 : vector<16x256xf32>
    %174 = math.exp %173 : vector<16x256xf32>
    %cst_33 = arith.constant 1.000000e+00 : f32
    %175 = vector.broadcast %cst_33 : f32 to vector<16x256xf32>
    %176 = arith.addf %175, %174 : vector<16x256xf32>
    %177 = arith.divf %175, %176 : vector<16x256xf32>
    %178 = vector.extract_strided_slice %177 {offsets = [0, 0], sizes = [16, 128], strides = [1, 1]} : vector<16x256xf32> to vector<16x128xf32>
    %179 = vector.extract_strided_slice %177 {offsets = [0, 128], sizes = [16, 128], strides = [1, 1]} : vector<16x256xf32> to vector<16x128xf32>
    %180 = vector.extract_strided_slice %167 {offsets = [0, 256], sizes = [16, 128], strides = [1, 1]} : vector<16x384xf32> to vector<16x128xf32>
    %181 = vector.extract_strided_slice %169 {offsets = [0, 256], sizes = [16, 128], strides = [1, 1]} : vector<16x384xf32> to vector<16x128xf32>
    %182 = arith.addf %181, %15 : vector<16x128xf32>
    %183 = arith.mulf %178, %182 : vector<16x128xf32>
    %184 = arith.addf %180, %183 : vector<16x128xf32>
    %185 = math.tanh %184 : vector<16x128xf32>
    %186 = arith.subf %166, %185 : vector<16x128xf32>
    %187 = arith.mulf %179, %186 : vector<16x128xf32>
    %188 = arith.addf %185, %187 : vector<16x128xf32>
    %c6_i32 = arith.constant 6 : i32
    %189 = vector.broadcast %c6_i32 : i32 to vector<16x128xi32>
    %190 = arith.cmpi sgt, %12, %189 : vector<16x128xi32>
    %191 = arith.select %190, %188, %166 : vector<16x128xi1>, vector<16x128xf32>
    %c112 = arith.constant 112 : index
    %c0_34 = arith.constant 0 : index
    %192 = vector.load %arg10[%c112, %c0_34] : memref<128x384xf32, #tpu.memory_space<vmem>>, vector<16x384xf32>
    %193 = vector.extract_strided_slice %191 {offsets = [0, 0], sizes = [16, 32], strides = [1, 1]} : vector<16x128xf32> to vector<16x32xf32>
    %cst_35 = arith.constant dense<0.000000e+00> : vector<16x384xf32>
    %194 = tpu.matmul %193, %9, %cst_35 {dimension_numbers = #tpu.dot_dimension_numbers<[1], [0], [0], [1], [0, 0, 1, 1], [], []>} : vector<16x32xf32>, vector<32x384xf32>, vector<16x384xf32> -> vector<16x384xf32>
    %195 = vector.extract_strided_slice %192 {offsets = [0, 0], sizes = [16, 256], strides = [1, 1]} : vector<16x384xf32> to vector<16x256xf32>
    %196 = vector.extract_strided_slice %194 {offsets = [0, 0], sizes = [16, 256], strides = [1, 1]} : vector<16x384xf32> to vector<16x256xf32>
    %197 = arith.addf %195, %196 : vector<16x256xf32>
    %198 = arith.negf %197 : vector<16x256xf32>
    %199 = math.exp %198 : vector<16x256xf32>
    %cst_36 = arith.constant 1.000000e+00 : f32
    %200 = vector.broadcast %cst_36 : f32 to vector<16x256xf32>
    %201 = arith.addf %200, %199 : vector<16x256xf32>
    %202 = arith.divf %200, %201 : vector<16x256xf32>
    %203 = vector.extract_strided_slice %202 {offsets = [0, 0], sizes = [16, 128], strides = [1, 1]} : vector<16x256xf32> to vector<16x128xf32>
    %204 = vector.extract_strided_slice %202 {offsets = [0, 128], sizes = [16, 128], strides = [1, 1]} : vector<16x256xf32> to vector<16x128xf32>
    %205 = vector.extract_strided_slice %192 {offsets = [0, 256], sizes = [16, 128], strides = [1, 1]} : vector<16x384xf32> to vector<16x128xf32>
    %206 = vector.extract_strided_slice %194 {offsets = [0, 256], sizes = [16, 128], strides = [1, 1]} : vector<16x384xf32> to vector<16x128xf32>
    %207 = arith.addf %206, %15 : vector<16x128xf32>
    %208 = arith.mulf %203, %207 : vector<16x128xf32>
    %209 = arith.addf %205, %208 : vector<16x128xf32>
    %210 = math.tanh %209 : vector<16x128xf32>
    %211 = arith.subf %191, %210 : vector<16x128xf32>
    %212 = arith.mulf %204, %211 : vector<16x128xf32>
    %213 = arith.addf %210, %212 : vector<16x128xf32>
    %c7_i32 = arith.constant 7 : i32
    %214 = vector.broadcast %c7_i32 : i32 to vector<16x128xi32>
    %215 = arith.cmpi sgt, %12, %214 : vector<16x128xi32>
    %216 = arith.select %215, %213, %191 : vector<16x128xi1>, vector<16x128xf32>
    %217 = vector.extract_strided_slice %216 {offsets = [0, 0], sizes = [8, 32], strides = [1, 1]} : vector<16x128xf32> to vector<8x32xf32>
    %c0_37 = arith.constant 0 : index
    %c0_38 = arith.constant 0 : index
    %c0_39 = arith.constant 0 : index
    %218 = vector.load %arg5[%c0_37, %c0_38, %c0_39] : memref<2x32x64xf32, #tpu.memory_space<vmem>>, vector<1x32x64xf32>
    %219 = vector.shape_cast %218 : vector<1x32x64xf32> to vector<32x64xf32>
    %cst_40 = arith.constant dense<0.000000e+00> : vector<8x64xf32>
    %220 = tpu.matmul %217, %219, %cst_40 {dimension_numbers = #tpu.dot_dimension_numbers<[1], [0], [0], [1], [0, 0, 1, 1], [], []>} : vector<8x32xf32>, vector<32x64xf32>, vector<8x64xf32> -> vector<8x64xf32>
    %221 = vector.extract_strided_slice %216 {offsets = [8, 0], sizes = [8, 32], strides = [1, 1]} : vector<16x128xf32> to vector<8x32xf32>
    %c1 = arith.constant 1 : index
    %c0_41 = arith.constant 0 : index
    %c0_42 = arith.constant 0 : index
    %222 = vector.load %arg5[%c1, %c0_41, %c0_42] : memref<2x32x64xf32, #tpu.memory_space<vmem>>, vector<1x32x64xf32>
    %223 = vector.shape_cast %222 : vector<1x32x64xf32> to vector<32x64xf32>
    %cst_43 = arith.constant dense<0.000000e+00> : vector<8x64xf32>
    %224 = tpu.matmul %221, %223, %cst_43 {dimension_numbers = #tpu.dot_dimension_numbers<[1], [0], [0], [1], [0, 0, 1, 1], [], []>} : vector<8x32xf32>, vector<32x64xf32>, vector<8x64xf32> -> vector<8x64xf32>
    %225 = arith.addf %220, %224 : vector<8x64xf32>
    %c0_44 = arith.constant 0 : index
    %c0_45 = arith.constant 0 : index
    %226 = vector.load %arg6[%c0_44, %c0_45] : memref<1x64xf32, #tpu.memory_space<vmem>>, vector<1x64xf32>
    %227 = vector.broadcast %226 : vector<1x64xf32> to vector<8x64xf32>
    %228 = arith.addf %225, %227 : vector<8x64xf32>
    %229 = math.tanh %228 : vector<8x64xf32>
    %c0_46 = arith.constant 0 : index
    %c0_47 = arith.constant 0 : index
    %230 = vector.load %arg7[%c0_46, %c0_47] : memref<64x3xf32, #tpu.memory_space<vmem>>, vector<64x3xf32>
    %cst_48 = arith.constant dense<0.000000e+00> : vector<8x3xf32>
    %231 = tpu.matmul %229, %230, %cst_48 {dimension_numbers = #tpu.dot_dimension_numbers<[1], [0], [0], [1], [0, 0, 1, 1], [], []>} : vector<8x64xf32>, vector<64x3xf32>, vector<8x3xf32> -> vector<8x3xf32>
    %c0_49 = arith.constant 0 : index
    %c0_50 = arith.constant 0 : index
    %232 = vector.load %arg8[%c0_49, %c0_50] : memref<1x3xf32, #tpu.memory_space<vmem>>, vector<1x3xf32>
    %233 = vector.broadcast %232 : vector<1x3xf32> to vector<8x3xf32>
    %234 = arith.addf %231, %233 : vector<8x3xf32>
    %c0_51 = arith.constant 0 : index
    %c0_52 = arith.constant 0 : index
    %235 = vector.load %arg9[%c0_51, %c0_52] : memref<8x3xf32, #tpu.memory_space<vmem>>, vector<8x3xf32>
    tpu.vector_store %arg9[%c0_51, %c0_52], %234 {strides = array<i32>} : memref<8x3xf32, #tpu.memory_space<vmem>>, vector<8x3xf32>,
    return
  }
}

</mosaic_0001>

<llo_original>
// kernel: nli_forward.1
$region0: #{nli_forward.1}
  #allocation0 [shape = 'u32[]', space=smem, size = 0x4, offset = 0x4, fixed_abs, tag = 'smem constant byte address 0x4 - core index']
  #allocation1 [shape = 'u32[72,128]{1,0:T(1,128)}', space=vmem, size = 0x9000, scoped, tag = 'internal scratch']
  #allocation2 [shape = 'f32[128,384]{1,0:T(8,128)}', space=vmem, size = 0x30000, scoped, tag = 'scratch operand']
  %s0 = inlined_call_operand.vmem [shape: s32[128,1], index: 0, kind: input, shape index: {}]
  %s1 = inlined_call_operand.vmem [shape: s32[16,1], index: 1, kind: input, shape index: {}]
  %s2 = inlined_call_operand.hbm [shape: f32[128,384], index: 2, kind: input, shape index: {}]
  %s3 = inlined_call_operand.vmem [shape: f32[32,384], index: 3, kind: input, shape index: {}]
  %s4 = inlined_call_operand.vmem [shape: f32[1,128], index: 4, kind: input, shape index: {}]
  %s5 = inlined_call_operand.vmem [shape: f32[2,32,64], index: 5, kind: input, shape index: {}]
  %s6 = inlined_call_operand.vmem [shape: f32[1,64], index: 6, kind: input, shape index: {}]
  %s7 = inlined_call_operand.vmem [shape: f32[64,3], index: 7, kind: input, shape index: {}]
  %s8 = inlined_call_operand.vmem [shape: f32[1,3], index: 8, kind: input, shape index: {}]
  %s9 = inlined_call_operand.vmem [shape: f32[8,3], index: 9, kind: output, shape index: {}]
  %s10 = sld [smem:[#allocation0]]
  $region50: #{nli_forward.1} parent=0
    _
  %s12 = ssub.s32 1, %s10
  %s13 = scalar_select 0, %s12, %s10
  $region1: #{nli_forward.1} parent=0
    #allocation3 [shape = 'u8[196608]{0}', space=vmem, size = 0x30000, scoped, tag = 'input window, operand 2, single buffered']
    #allocation4 [shape = 's32[1]{0}', space=sflag, size = 0x4, scoped, tag = 'scoped memory for nli_forward.1']
    %14 = vsyncpa [#allocation4], 0
    // Predicated region
    $region2: #{nli_forward.1} parent=1 // pred_check
      _
    $region3: #{nli_forward.1} parent=1 // pred_check_branch
      %16 = sbr.rel (0) target = $region5
    $region4: #{nli_forward.1} parent=1 // pred_region
      _
    $region5: #{nli_forward.1} parent=1 // pred_fallthru
      _
    // Predicated region
    $region6: #{nli_forward.1} parent=1 // pred_check
      _
    $region7: #{nli_forward.1} parent=1 // pred_check_branch
      %18 = sbr.rel (0) target = $region9
    $region8: #{nli_forward.1} parent=1 // pred_region
      _
    $region9: #{nli_forward.1} parent=1 // pred_fallthru
      _
    // Predicated region
    $region10: #{nli_forward.1} parent=1 // pred_check
      _
    $region11: #{nli_forward.1} parent=1 // pred_check_branch
      %20 = sbr.rel (0) target = $region13
    $region12: #{nli_forward.1} parent=1 // pred_region
      %22 = vsyncadd [#allocation4], 0
      %s23 = sshll.u32 %s2, 4
      %s24 = int_to_ptr.hbm [resolvable:$true] %s23
      %s25 = sshll.u32 [#allocation3], 4
      %s26 = int_to_ptr.vmem [resolvable:$true] %s25
      %31 = dma.hbm_to_vmem [thread:$0]  %s24, 6144, %s26, [#allocation4], 384, 384, 24
    $region13: #{nli_forward.1} parent=1 // pred_fallthru
      _
    // Predicated region
    $region14: #{nli_forward.1} parent=1 // pred_check
      _
    $region15: #{nli_forward.1} parent=1 // pred_check_branch
      %33 = sbr.rel (0) target = $region17
    $region16: #{nli_forward.1} parent=1 // pred_region
      _
    $region17: #{nli_forward.1} parent=1 // pred_fallthru
      _
    // Predicated region
    $region18: #{nli_forward.1} parent=1 // pred_check
      _
    $region19: #{nli_forward.1} parent=1 // pred_check_branch
      %35 = sbr.rel (0) target = $region21
    $region20: #{nli_forward.1} parent=1 // pred_region
      _
    $region21: #{nli_forward.1} parent=1 // pred_fallthru
      _
    // Predicated region
    $region22: #{nli_forward.1} parent=1 // pred_check
      _
    $region23: #{nli_forward.1} parent=1 // pred_check_branch
      %37 = sbr.rel (0) target = $region25
    $region24: #{nli_forward.1} parent=1 // pred_region
      _
    $region25: #{nli_forward.1} parent=1 // pred_fallthru
      _
    // Predicated region
    $region26: #{nli_forward.1} parent=1 // pred_check
      _
    $region27: #{nli_forward.1} parent=1 // pred_check_branch
      %39 = sbr.rel (0) target = $region29
    $region28: #{nli_forward.1} parent=1 // pred_region
      _
    $region29: #{nli_forward.1} parent=1 // pred_fallthru
      _
    // Predicated region
    $region30: #{nli_forward.1} parent=1 // pred_check
      _
    $region31: #{nli_forward.1} parent=1 // pred_check_branch
      %41 = sbr.rel (0) target = $region33
    $region32: #{nli_forward.1} parent=1 // pred_region
      _
    $region33: #{nli_forward.1} parent=1 // pred_fallthru
      _
    // Predicated region
    $region34: #{nli_forward.1} parent=1 // pred_check
      _
    $region35: #{nli_forward.1} parent=1 // pred_check_branch
      %43 = sbr.rel (0) target = $region37
    $region36: #{nli_forward.1} parent=1 // pred_region
      _
    $region37: #{nli_forward.1} parent=1 // pred_fallthru
      _
    // Predicated region
    $region38: #{nli_forward.1} parent=1 // pred_check
      _
    $region39: #{nli_forward.1} parent=1 // pred_check_branch
      %45 = sbr.rel (0) target = $region41
    $region40: #{nli_forward.1} parent=1 // pred_region
      %47 = dma.done [#allocation4], 6144
    $region41: #{nli_forward.1} parent=1 // pred_fallthru
      _
    %v48 = vld [vmem:[%s0] sm:$0xff]
    %v49 = vld [vmem:[%s0 + $0x8] sm:$0xff]
    %v50 = vld [vmem:[%s0 + $0x10] sm:$0xff]
    %v51 = vld [vmem:[%s0 + $0x18] sm:$0xff]
    %v52 = vld [vmem:[%s0 + $0x20] sm:$0xff]
    %v53 = vld [vmem:[%s0 + $0x28] sm:$0xff]
    %v54 = vld [vmem:[%s0 + $0x30] sm:$0xff]
    %v55 = vld [vmem:[%s0 + $0x38] sm:$0xff]
    %v56 = vld [vmem:[%s0 + $0x40] sm:$0xff]
    %v57 = vld [vmem:[%s0 + $0x48] sm:$0xff]
    %v58 = vld [vmem:[%s0 + $0x50] sm:$0xff]
    %v59 = vld [vmem:[%s0 + $0x58] sm:$0xff]
    %v60 = vld [vmem:[%s0 + $0x60] sm:$0xff]
    %v61 = vld [vmem:[%s0 + $0x68] sm:$0xff]
    %v62 = vld [vmem:[%s0 + $0x70] sm:$0xff]
    %v63 = vld [vmem:[%s0 + $0x78] sm:$0xff]
    %v64 = vlaneseq
    %v65 = vand.u32 %v64, 127
    %66 = vset.pattern.permute.xlu0 0
    %67 = vperm.xlu0 %66, %v48
    %v68 = vpop.permute.xlu0 %67
    %69 = vset.pattern.permute.xlu0 0
    %70 = vperm.xlu0 %69, %v49
    %v71 = vpop.permute.xlu0 %70
    %72 = vset.pattern.permute.xlu0 0
    %73 = vperm.xlu0 %72, %v50
    %v74 = vpop.permute.xlu0 %73
    %75 = vset.pattern.permute.xlu0 0
    %76 = vperm.xlu0 %75, %v51
    %v77 = vpop.permute.xlu0 %76
    %78 = vset.pattern.permute.xlu0 0
    %79 = vperm.xlu0 %78, %v52
    %v80 = vpop.permute.xlu0 %79
    %81 = vset.pattern.permute.xlu0 0
    %82 = vperm.xlu0 %81, %v53
    %v83 = vpop.permute.xlu0 %82
    %84 = vset.pattern.permute.xlu0 0
    %85 = vperm.xlu0 %84, %v54
    %v86 = vpop.permute.xlu0 %85
    %87 = vset.pattern.permute.xlu0 0
    %88 = vperm.xlu0 %87, %v55
    %v89 = vpop.permute.xlu0 %88
    %90 = vset.pattern.permute.xlu0 0
    %91 = vperm.xlu0 %90, %v56
    %v92 = vpop.permute.xlu0 %91
    %93 = vset.pattern.permute.xlu0 0
    %94 = vperm.xlu0 %93, %v57
    %v95 = vpop.permute.xlu0 %94
    %96 = vset.pattern.permute.xlu0 0
    %97 = vperm.xlu0 %96, %v58
    %v98 = vpop.permute.xlu0 %97
    %99 = vset.pattern.permute.xlu0 0
    %100 = vperm.xlu0 %99, %v59
    %v101 = vpop.permute.xlu0 %100
    %102 = vset.pattern.permute.xlu0 0
    %103 = vperm.xlu0 %102, %v60
    %v104 = vpop.permute.xlu0 %103
    %105 = vset.pattern.permute.xlu0 0
    %106 = vperm.xlu0 %105, %v61
    %v107 = vpop.permute.xlu0 %106
    %108 = vset.pattern.permute.xlu0 0
    %109 = vperm.xlu0 %108, %v62
    %v110 = vpop.permute.xlu0 %109
    %111 = vset.pattern.permute.xlu0 0
    %112 = vperm.xlu0 %111, %v63
    %v113 = vpop.permute.xlu0 %112
    %vm114 = vcmp.eq.s32.totalorder %v65, %v68
    %vm115 = vcmp.eq.s32.totalorder %v65, %v71
    %vm116 = vcmp.eq.s32.totalorder %v65, %v74
    %vm117 = vcmp.eq.s32.totalorder %v65, %v77
    %vm118 = vcmp.eq.s32.totalorder %v65, %v80
    %vm119 = vcmp.eq.s32.totalorder %v65, %v83
    %vm120 = vcmp.eq.s32.totalorder %v65, %v86
    %vm121 = vcmp.eq.s32.totalorder %v65, %v89
    %vm122 = vcmp.eq.s32.totalorder %v65, %v92
    %vm123 = vcmp.eq.s32.totalorder %v65, %v95
    %vm124 = vcmp.eq.s32.totalorder %v65, %v98
    %vm125 = vcmp.eq.s32.totalorder %v65, %v101
    %vm126 = vcmp.eq.s32.totalorder %v65, %v104
    %vm127 = vcmp.eq.s32.totalorder %v65, %v107
    %vm128 = vcmp.eq.s32.totalorder %v65, %v110
    %vm129 = vcmp.eq.s32.totalorder %v65, %v113
    %v130 = vsel %vm114, 1, 0
    %v131 = vsel %vm115, 1, 0
    %v132 = vsel %vm116, 1, 0
    %v133 = vsel %vm117, 1, 0
    %v134 = vsel %vm118, 1, 0
    %v135 = vsel %vm119, 1, 0
    %v136 = vsel %vm120, 1, 0
    %v137 = vsel %vm121, 1, 0
    %v138 = vsel %vm122, 1, 0
    %v139 = vsel %vm123, 1, 0
    %v140 = vsel %vm124, 1, 0
    %v141 = vsel %vm125, 1, 0
    %v142 = vsel %vm126, 1, 0
    %v143 = vsel %vm127, 1, 0
    %v144 = vsel %vm128, 1, 0
    %v145 = vsel %vm129, 1, 0
    %v146 = vcvt.s32.f32 %v130
    %v147 = vcvt.s32.f32 %v131
    %v148 = vcvt.s32.f32 %v132
    %v149 = vcvt.s32.f32 %v133
    %v150 = vcvt.s32.f32 %v134
    %v151 = vcvt.s32.f32 %v135
    %v152 = vcvt.s32.f32 %v136
    %v153 = vcvt.s32.f32 %v137
    %v154 = vcvt.s32.f32 %v138
    %v155 = vcvt.s32.f32 %v139
    %v156 = vcvt.s32.f32 %v140
    %v157 = vcvt.s32.f32 %v141
    %v158 = vcvt.s32.f32 %v142
    %v159 = vcvt.s32.f32 %v143
    %v160 = vcvt.s32.f32 %v144
    %v161 = vcvt.s32.f32 %v145
    %v162 = vld [vmem:[#allocation3] sm:$0xff]
    %v163 = vld [vmem:[#allocation3 + $0x8] sm:$0xff]
    %v164 = vld [vmem:[#allocation3 + $0x10] sm:$0xff]
    %v165 = vld [vmem:[#allocation3 + $0x18] sm:$0xff]
    %v166 = vld [vmem:[#allocation3 + $0x20] sm:$0xff]
    %v167 = vld [vmem:[#allocation3 + $0x28] sm:$0xff]
    %v168 = vld [vmem:[#allocation3 + $0x30] sm:$0xff]
    %v169 = vld [vmem:[#allocation3 + $0x38] sm:$0xff]
    %v170 = vld [vmem:[#allocation3 + $0x40] sm:$0xff]
    %v171 = vld [vmem:[#allocation3 + $0x48] sm:$0xff]
    %v172 = vld [vmem:[#allocation3 + $0x50] sm:$0xff]
    %v173 = vld [vmem:[#allocation3 + $0x58] sm:$0xff]
    %v174 = vld [vmem:[#allocation3 + $0x60] sm:$0xff]
    %v175 = vld [vmem:[#allocation3 + $0x68] sm:$0xff]
    %v176 = vld [vmem:[#allocation3 + $0x70] sm:$0xff]
    %v177 = vld [vmem:[#allocation3 + $0x78] sm:$0xff]
    %v178 = vld [vmem:[#allocation3 + $0x80] sm:$0xff]
    %v179 = vld [vmem:[#allocation3 + $0x88] sm:$0xff]
    %v180 = vld [vmem:[#allocation3 + $0x90] sm:$0xff]
    %v181 = vld [vmem:[#allocation3 + $0x98] sm:$0xff]
    %v182 = vld [vmem:[#allocation3 + $0xa0] sm:$0xff]
    %v183 = vld [vmem:[#allocation3 + $0xa8] sm:$0xff]
    %v184 = vld [vmem:[#allocation3 + $0xb0] sm:$0xff]
    %v185 = vld [vmem:[#allocation3 + $0xb8] sm:$0xff]
    %v186 = vld [vmem:[#allocation3 + $0xc0] sm:$0xff]
    %v187 = vld [vmem:[#allocation3 + $0xc8] sm:$0xff]
    %v188 = vld [vmem:[#allocation3 + $0xd0] sm:$0xff]
    %v189 = vld [vmem:[#allocation3 + $0xd8] sm:$0xff]
    %v190 = vld [vmem:[#allocation3 + $0xe0] sm:$0xff]
    %v191 = vld [vmem:[#allocation3 + $0xe8] sm:$0xff]
    %v192 = vld [vmem:[#allocation3 + $0xf0] sm:$0xff]
    %v193 = vld [vmem:[#allocation3 + $0xf8] sm:$0xff]
    %v194 = vld [vmem:[#allocation3 + $0x100] sm:$0xff]
    %v195 = vld [vmem:[#allocation3 + $0x108] sm:$0xff]
    %v196 = vld [vmem:[#allocation3 + $0x110] sm:$0xff]
    %v197 = vld [vmem:[#allocation3 + $0x118] sm:$0xff]
    %v198 = vld [vmem:[#allocation3 + $0x120] sm:$0xff]
    %v199 = vld [vmem:[#allocation3 + $0x128] sm:$0xff]
    %v200 = vld [vmem:[#allocation3 + $0x130] sm:$0xff]
    %v201 = vld [vmem:[#allocation3 + $0x138] sm:$0xff]
    %v202 = vld [vmem:[#allocation3 + $0x140] sm:$0xff]
    %v203 = vld [vmem:[#allocation3 + $0x148] sm:$0xff]
    %v204 = vld [vmem:[#allocation3 + $0x150] sm:$0xff]
    %v205 = vld [vmem:[#allocation3 + $0x158] sm:$0xff]
    %v206 = vld [vmem:[#allocation3 + $0x160] sm:$0xff]
    %v207 = vld [vmem:[#allocation3 + $0x168] sm:$0xff]
    %v208 = vld [vmem:[#allocation3 + $0x170] sm:$0xff]
    %v209 = vld [vmem:[#allocation3 + $0x178] sm:$0xff]
    %210 = vmatpush.msra.mxu0 %v207
    %211 = vmatpush.msra.mxu0 %v204
    %212 = vmatpush.msra.mxu0 %v201
    %213 = vmatpush.msra.mxu0 %v198
    %214 = vmatpush.msra.mxu0 %v195
    %215 = vmatpush.msra.mxu0 %v192
    %216 = vmatpush.msra.mxu0 %v189
    %217 = vmatpush.msra.mxu0 %v186
    %218 = vmatpush.msra.mxu0 %v183
    %219 = vmatpush.msra.mxu0 %v180
    %220 = vmatpush.msra.mxu0 %v177
    %221 = vmatpush.msra.mxu0 %v174
    %222 = vmatpush.msra.mxu0 %v171
    %223 = vmatpush.msra.mxu0 %v168
    %224 = vmatpush.msra.mxu0 %v165
    %225 = vmatpush.msra.mxu0 %v162
    %226 = vmatmul.f32.gmra.mxu0 %v146
    %v227 = vpop.f32.mrf.mxu0
    %v228 = vadd.f32 0.0, %v227
    %229 = vmatmul.f32.gmra.mxu0 %v147
    %v230 = vpop.f32.mrf.mxu0
    %v231 = vadd.f32 0.0, %v230
    %232 = vmatmul.f32.gmra.mxu0 %v148
    %v233 = vpop.f32.mrf.mxu0
    %v234 = vadd.f32 0.0, %v233
    %235 = vmatmul.f32.gmra.mxu0 %v149
    %v236 = vpop.f32.mrf.mxu0
    %v237 = vadd.f32 0.0, %v236
    %238 = vmatmul.f32.gmra.mxu0 %v150
    %v239 = vpop.f32.mrf.mxu0
    %v240 = vadd.f32 0.0, %v239
    %241 = vmatmul.f32.gmra.mxu0 %v151
    %v242 = vpop.f32.mrf.mxu0
    %v243 = vadd.f32 0.0, %v242
    %244 = vmatmul.f32.gmra.mxu0 %v152
    %v245 = vpop.f32.mrf.mxu0
    %v246 = vadd.f32 0.0, %v245
    %247 = vmatmul.f32.gmra.mxu0 %v153
    %v248 = vpop.f32.mrf.mxu0
    %v249 = vadd.f32 0.0, %v248
    %250 = vmatmul.f32.gmra.mxu0 %v154
    %v251 = vpop.f32.mrf.mxu0
    %v252 = vadd.f32 0.0, %v251
    %253 = vmatmul.f32.gmra.mxu0 %v155
    %v254 = vpop.f32.mrf.mxu0
    %v255 = vadd.f32 0.0, %v254
    %256 = vmatmul.f32.gmra.mxu0 %v156
    %v257 = vpop.f32.mrf.mxu0
    %v258 = vadd.f32 0.0, %v257
    %259 = vmatmul.f32.gmra.mxu0 %v157
    %v260 = vpop.f32.mrf.mxu0
    %v261 = vadd.f32 0.0, %v260
    %262 = vmatmul.f32.gmra.mxu0 %v158
    %v263 = vpop.f32.mrf.mxu0
    %v264 = vadd.f32 0.0, %v263
    %265 = vmatmul.f32.gmra.mxu0 %v159
    %v266 = vpop.f32.mrf.mxu0
    %v267 = vadd.f32 0.0, %v266
    %268 = vmatmul.f32.gmra.mxu0 %v160
    %v269 = vpop.f32.mrf.mxu0
    %v270 = vadd.f32 0.0, %v269
    %271 = vmatmul.f32.gmra.mxu0 %v161
    %v272 = vpop.f32.mrf.mxu0
    %v273 = vadd.f32 0.0, %v272
    %274 = vdwg.mxu0
    %275 = vmatpush.msra.mxu0 %v208
    %276 = vmatpush.msra.mxu0 %v205
    %277 = vmatpush.msra.mxu0 %v202
    %278 = vmatpush.msra.mxu0 %v199
    %279 = vmatpush.msra.mxu0 %v196
    %280 = vmatpush.msra.mxu0 %v193
    %281 = vmatpush.msra.mxu0 %v190
    %282 = vmatpush.msra.mxu0 %v187
    %283 = vmatpush.msra.mxu0 %v184
    %284 = vmatpush.msra.mxu0 %v181
    %285 = vmatpush.msra.mxu0 %v178
    %286 = vmatpush.msra.mxu0 %v175
    %287 = vmatpush.msra.mxu0 %v172
    %288 = vmatpush.msra.mxu0 %v169
    %289 = vmatpush.msra.mxu0 %v166
    %290 = vmatpush.msra.mxu0 %v163
    %291 = vmatmul.f32.gmra.mxu0 %v146
    %v292 = vpop.f32.mrf.mxu0
    %v293 = vadd.f32 0.0, %v292
    %294 = vmatmul.f32.gmra.mxu0 %v147
    %v295 = vpop.f32.mrf.mxu0
    %v296 = vadd.f32 0.0, %v295
    %297 = vmatmul.f32.gmra.mxu0 %v148
    %v298 = vpop.f32.mrf.mxu0
    %v299 = vadd.f32 0.0, %v298
    %300 = vmatmul.f32.gmra.mxu0 %v149
    %v301 = vpop.f32.mrf.mxu0
    %v302 = vadd.f32 0.0, %v301
    %303 = vmatmul.f32.gmra.mxu0 %v150
    %v304 = vpop.f32.mrf.mxu0
    %v305 = vadd.f32 0.0, %v304
    %306 = vmatmul.f32.gmra.mxu0 %v151
    %v307 = vpop.f32.mrf.mxu0
    %v308 = vadd.f32 0.0, %v307
    %309 = vmatmul.f32.gmra.mxu0 %v152
    %v310 = vpop.f32.mrf.mxu0
    %v311 = vadd.f32 0.0, %v310
    %312 = vmatmul.f32.gmra.mxu0 %v153
    %v313 = vpop.f32.mrf.mxu0
    %v314 = vadd.f32 0.0, %v313
    %315 = vmatmul.f32.gmra.mxu0 %v154
    %v316 = vpop.f32.mrf.mxu0
    %v317 = vadd.f32 0.0, %v316
    %318 = vmatmul.f32.gmra.mxu0 %v155
    %v319 = vpop.f32.mrf.mxu0
    %v320 = vadd.f32 0.0, %v319
    %321 = vmatmul.f32.gmra.mxu0 %v156
    %v322 = vpop.f32.mrf.mxu0
    %v323 = vadd.f32 0.0, %v322
    %324 = vmatmul.f32.gmra.mxu0 %v157
    %v325 = vpop.f32.mrf.mxu0
    %v326 = vadd.f32 0.0, %v325
    %327 = vmatmul.f32.gmra.mxu0 %v158
    %v328 = vpop.f32.mrf.mxu0
    %v329 = vadd.f32 0.0, %v328
    %330 = vmatmul.f32.gmra.mxu0 %v159
    %v331 = vpop.f32.mrf.mxu0
    %v332 = vadd.f32 0.0, %v331
    %333 = vmatmul.f32.gmra.mxu0 %v160
    %v334 = vpop.f32.mrf.mxu0
    %v335 = vadd.f32 0.0, %v334
    %336 = vmatmul.f32.gmra.mxu0 %v161
    %v337 = vpop.f32.mrf.mxu0
    %v338 = vadd.f32 0.0, %v337
    %339 = vdwg.mxu0
    %340 = vmatpush.msra.mxu0 %v209
    %341 = vmatpush.msra.mxu0 %v206
    %342 = vmatpush.msra.mxu0 %v203
    %343 = vmatpush.msra.mxu0 %v200
    %344 = vmatpush.msra.mxu0 %v197
    %345 = vmatpush.msra.mxu0 %v194
    %346 = vmatpush.msra.mxu0 %v191
    %347 = vmatpush.msra.mxu0 %v188
    %348 = vmatpush.msra.mxu0 %v185
    %349 = vmatpush.msra.mxu0 %v182
    %350 = vmatpush.msra.mxu0 %v179
    %351 = vmatpush.msra.mxu0 %v176
    %352 = vmatpush.msra.mxu0 %v173
    %353 = vmatpush.msra.mxu0 %v170
    %354 = vmatpush.msra.mxu0 %v167
    %355 = vmatpush.msra.mxu0 %v164
    %356 = vmatmul.f32.gmra.mxu0 %v146
    %v357 = vpop.f32.mrf.mxu0
    %v358 = vadd.f32 0.0, %v357
    %359 = vmatmul.f32.gmra.mxu0 %v147
    %v360 = vpop.f32.mrf.mxu0
    %v361 = vadd.f32 0.0, %v360
    %362 = vmatmul.f32.gmra.mxu0 %v148
    %v363 = vpop.f32.mrf.mxu0
    %v364 = vadd.f32 0.0, %v363
    %365 = vmatmul.f32.gmra.mxu0 %v149
    %v366 = vpop.f32.mrf.mxu0
    %v367 = vadd.f32 0.0, %v366
    %368 = vmatmul.f32.gmra.mxu0 %v150
    %v369 = vpop.f32.mrf.mxu0
    %v370 = vadd.f32 0.0, %v369
    %371 = vmatmul.f32.gmra.mxu0 %v151
    %v372 = vpop.f32.mrf.mxu0
    %v373 = vadd.f32 0.0, %v372
    %374 = vmatmul.f32.gmra.mxu0 %v152
    %v375 = vpop.f32.mrf.mxu0
    %v376 = vadd.f32 0.0, %v375
    %377 = vmatmul.f32.gmra.mxu0 %v153
    %v378 = vpop.f32.mrf.mxu0
    %v379 = vadd.f32 0.0, %v378
    %380 = vmatmul.f32.gmra.mxu0 %v154
    %v381 = vpop.f32.mrf.mxu0
    %v382 = vadd.f32 0.0, %v381
    %383 = vmatmul.f32.gmra.mxu0 %v155
    %v384 = vpop.f32.mrf.mxu0
    %v385 = vadd.f32 0.0, %v384
    %386 = vmatmul.f32.gmra.mxu0 %v156
    %v387 = vpop.f32.mrf.mxu0
    %v388 = vadd.f32 0.0, %v387
    %389 = vmatmul.f32.gmra.mxu0 %v157
    %v390 = vpop.f32.mrf.mxu0
    %v391 = vadd.f32 0.0, %v390
    %392 = vmatmul.f32.gmra.mxu0 %v158
    %v393 = vpop.f32.mrf.mxu0
    %v394 = vadd.f32 0.0, %v393
    %395 = vmatmul.f32.gmra.mxu0 %v159
    %v396 = vpop.f32.mrf.mxu0
    %v397 = vadd.f32 0.0, %v396
    %398 = vmatmul.f32.gmra.mxu0 %v160
    %v399 = vpop.f32.mrf.mxu0
    %v400 = vadd.f32 0.0, %v399
    %401 = vmatmul.f32.gmra.mxu0 %v161
    %v402 = vpop.f32.mrf.mxu0
    %v403 = vadd.f32 0.0, %v402
    %404 = vdwg.mxu0
    %405 = vst [vmem:[#allocation2] sm:$0xff] %v228
    %406 = vst [vmem:[#allocation2 + $0x8] sm:$0xff] %v293
    %407 = vst [vmem:[#allocation2 + $0x10] sm:$0xff] %v358
    %408 = vst [vmem:[#allocation2 + $0x18] sm:$0xff] %v231
    %409 = vst [vmem:[#allocation2 + $0x20] sm:$0xff] %v296
    %410 = vst [vmem:[#allocation2 + $0x28] sm:$0xff] %v361
    %411 = vst [vmem:[#allocation2 + $0x30] sm:$0xff] %v234
    %412 = vst [vmem:[#allocation2 + $0x38] sm:$0xff] %v299
    %413 = vst [vmem:[#allocation2 + $0x40] sm:$0xff] %v364
    %414 = vst [vmem:[#allocation2 + $0x48] sm:$0xff] %v237
    %415 = vst [vmem:[#allocation2 + $0x50] sm:$0xff] %v302
    %416 = vst [vmem:[#allocation2 + $0x58] sm:$0xff] %v367
    %417 = vst [vmem:[#allocation2 + $0x60] sm:$0xff] %v240
    %418 = vst [vmem:[#allocation2 + $0x68] sm:$0xff] %v305
    %419 = vst [vmem:[#allocation2 + $0x70] sm:$0xff] %v370
    %420 = vst [vmem:[#allocation2 + $0x78] sm:$0xff] %v243
    %421 = vst [vmem:[#allocation2 + $0x80] sm:$0xff] %v308
    %422 = vst [vmem:[#allocation2 + $0x88] sm:$0xff] %v373
    %423 = vst [vmem:[#allocation2 + $0x90] sm:$0xff] %v246
    %424 = vst [vmem:[#allocation2 + $0x98] sm:$0xff] %v311
    %425 = vst [vmem:[#allocation2 + $0xa0] sm:$0xff] %v376
    %426 = vst [vmem:[#allocation2 + $0xa8] sm:$0xff] %v249
    %427 = vst [vmem:[#allocation2 + $0xb0] sm:$0xff] %v314
    %428 = vst [vmem:[#allocation2 + $0xb8] sm:$0xff] %v379
    %429 = vst [vmem:[#allocation2 + $0xc0] sm:$0xff] %v252
    %430 = vst [vmem:[#allocation2 + $0xc8] sm:$0xff] %v317
    %431 = vst [vmem:[#allocation2 + $0xd0] sm:$0xff] %v382
    %432 = vst [vmem:[#allocation2 + $0xd8] sm:$0xff] %v255
    %433 = vst [vmem:[#allocation2 + $0xe0] sm:$0xff] %v320
    %434 = vst [vmem:[#allocation2 + $0xe8] sm:$0xff] %v385
    %435 = vst [vmem:[#allocation2 + $0xf0] sm:$0xff] %v258
    %436 = vst [vmem:[#allocation2 + $0xf8] sm:$0xff] %v323
    %437 = vst [vmem:[#allocation2 + $0x100] sm:$0xff] %v388
    %438 = vst [vmem:[#allocation2 + $0x108] sm:$0xff] %v261
    %439 = vst [vmem:[#allocation2 + $0x110] sm:$0xff] %v326
    %440 = vst [vmem:[#allocation2 + $0x118] sm:$0xff] %v391
    %441 = vst [vmem:[#allocation2 + $0x120] sm:$0xff] %v264
    %442 = vst [vmem:[#allocation2 + $0x128] sm:$0xff] %v329
    %443 = vst [vmem:[#allocation2 + $0x130] sm:$0xff] %v394
    %444 = vst [vmem:[#allocation2 + $0x138] sm:$0xff] %v267
    %445 = vst [vmem:[#allocation2 + $0x140] sm:$0xff] %v332
    %446 = vst [vmem:[#allocation2 + $0x148] sm:$0xff] %v397
    %447 = vst [vmem:[#allocation2 + $0x150] sm:$0xff] %v270
    %448 = vst [vmem:[#allocation2 + $0x158] sm:$0xff] %v335
    %449 = vst [vmem:[#allocation2 + $0x160] sm:$0xff] %v400
    %450 = vst [vmem:[#allocation2 + $0x168] sm:$0xff] %v273
    %451 = vst [vmem:[#allocation2 + $0x170] sm:$0xff] %v338
    %452 = vst [vmem:[#allocation2 + $0x178] sm:$0xff] %v403
    %v453 = vld [vmem:[%s3] sm:$0xff]
    %v454 = vld [vmem:[%s3 + $0x8] sm:$0xff]
    %v455 = vld [vmem:[%s3 + $0x10] sm:$0xff]
    %v456 = vld [vmem:[%s3 + $0x18] sm:$0xff]
    %v457 = vld [vmem:[%s3 + $0x20] sm:$0xff]
    %v458 = vld [vmem:[%s3 + $0x28] sm:$0xff]
    %v459 = vld [vmem:[%s3 + $0x30] sm:$0xff]
    %v460 = vld [vmem:[%s3 + $0x38] sm:$0xff]
    %v461 = vld [vmem:[%s3 + $0x40] sm:$0xff]
    %v462 = vld [vmem:[%s3 + $0x48] sm:$0xff]
    %v463 = vld [vmem:[%s3 + $0x50] sm:$0xff]
    %v464 = vld [vmem:[%s3 + $0x58] sm:$0xff]
    %v465 = vld [vmem:[%s1] sm:$0xff]
    %v466 = vld [vmem:[%s1 + $0x8] sm:$0xff]
    %467 = vset.pattern.permute.xlu0 0
    %468 = vperm.xlu0 %467, %v465
    %v469 = vpop.permute.xlu0 %468
    %470 = vset.pattern.permute.xlu0 0
    %471 = vperm.xlu0 %470, %v466
    %v472 = vpop.permute.xlu0 %471
    %v473 = vld [vmem:[%s4] sm:$0x1]
    %v475 = vperm.slane %v473, 0
    %v477 = vld [vmem:[#allocation2] sm:$0xff]
    %v478 = vld [vmem:[#allocation2 + $0x8] sm:$0xff]
    %v479 = vld [vmem:[#allocation2 + $0x10] sm:$0xff]
    %v480 = vld [vmem:[#allocation2 + $0x18] sm:$0xff]
    %v481 = vld [vmem:[#allocation2 + $0x20] sm:$0xff]
    %v482 = vld [vmem:[#allocation2 + $0x28] sm:$0xff]
    %vm483 = vcmask 261120
    %v485 = vsel %vm483, 0.0, 0
    %487 = vmatpush.msra.mxu0 0.0
    %488 = vmatpush.msra.mxu0 0.0
    %489 = vmatpush.msra.mxu0 0.0
    %490 = vmatpush.msra.mxu0 0.0
    %491 = vmatpush.msra.mxu0 0.0
    %492 = vmatpush.msra.mxu0 0.0
    %493 = vmatpush.msra.mxu0 0.0
    %494 = vmatpush.msra.mxu0 0.0
    %495 = vmatpush.msra.mxu0 0.0
    %496 = vmatpush.msra.mxu0 0.0
    %497 = vmatpush.msra.mxu0 0.0
    %498 = vmatpush.msra.mxu0 0.0
    %499 = vmatpush.msra.mxu0 %v462
    %500 = vmatpush.msra.mxu0 %v459
    %501 = vmatpush.msra.mxu0 %v456
    %502 = vmatpush.msra.mxu0 %v453
    %503 = vmatmul.f32.gmra.mxu0 %v485
    %v504 = vpop.f32.mrf.mxu0
    %v505 = vadd.f32 0.0, %v504
    %506 = vmatmul.f32.gmra.mxu0 %v485
    %v507 = vpop.f32.mrf.mxu0
    %v508 = vadd.f32 0.0, %v507
    %509 = vdwg.mxu0
    %510 = vmatpush.msra.mxu0 0.0
    %511 = vmatpush.msra.mxu0 0.0
    %512 = vmatpush.msra.mxu0 0.0
    %513 = vmatpush.msra.mxu0 0.0
    %514 = vmatpush.msra.mxu0 0.0
    %515 = vmatpush.msra.mxu0 0.0
    %516 = vmatpush.msra.mxu0 0.0
    %517 = vmatpush.msra.mxu0 0.0
    %518 = vmatpush.msra.mxu0 0.0
    %519 = vmatpush.msra.mxu0 0.0
    %520 = vmatpush.msra.mxu0 0.0
    %521 = vmatpush.msra.mxu0 0.0
    %522 = vmatpush.msra.mxu0 %v463
    %523 = vmatpush.msra.mxu0 %v460
    %524 = vmatpush.msra.mxu0 %v457
    %525 = vmatpush.msra.mxu0 %v454
    %526 = vmatmul.f32.gmra.mxu0 %v485
    %v527 = vpop.f32.mrf.mxu0
    %v528 = vadd.f32 0.0, %v527
    %529 = vmatmul.f32.gmra.mxu0 %v485
    %v530 = vpop.f32.mrf.mxu0
    %v531 = vadd.f32 0.0, %v530
    %532 = vdwg.mxu0
    %533 = vmatpush.msra.mxu0 0.0
    %534 = vmatpush.msra.mxu0 0.0
    %535 = vmatpush.msra.mxu0 0.0
    %536 = vmatpush.msra.mxu0 0.0
    %537 = vmatpush.msra.mxu0 0.0
    %538 = vmatpush.msra.mxu0 0.0
    %539 = vmatpush.msra.mxu0 0.0
    %540 = vmatpush.msra.mxu0 0.0
    %541 = vmatpush.msra.mxu0 0.0
    %542 = vmatpush.msra.mxu0 0.0
    %543 = vmatpush.msra.mxu0 0.0
    %544 = vmatpush.msra.mxu0 0.0
    %545 = vmatpush.msra.mxu0 %v464
    %546 = vmatpush.msra.mxu0 %v461
    %547 = vmatpush.msra.mxu0 %v458
    %548 = vmatpush.msra.mxu0 %v455
    %549 = vmatmul.f32.gmra.mxu0 %v485
    %v550 = vpop.f32.mrf.mxu0
    %v551 = vadd.f32 0.0, %v550
    %552 = vmatmul.f32.gmra.mxu0 %v485
    %v553 = vpop.f32.mrf.mxu0
    %v554 = vadd.f32 0.0, %v553
    %555 = vdwg.mxu0
    %v556 = vadd.f32 %v477, %v505
    %v557 = vadd.f32 %v478, %v528
    %v558 = vadd.f32 %v480, %v508
    %v559 = vadd.f32 %v481, %v531
    %v560 = vxor.u32 %v556, 2147483648
    %v561 = vxor.u32 %v557, 2147483648
    %v562 = vxor.u32 %v558, 2147483648
    %v563 = vxor.u32 %v559, 2147483648
    %v564 = vmul.f32 %v560, 1.442695
    %v565 = vpow.pop %v564
    %v566 = vmul.f32 %v561, 1.442695
    %v567 = vpow.pop %v566
    %v568 = vmul.f32 %v562, 1.442695
    %v569 = vpow.pop %v568
    %v570 = vmul.f32 %v563, 1.442695
    %v571 = vpow.pop %v570
    %v572 = vadd.f32 %v565, 1.0
    %v573 = vadd.f32 %v567, 1.0
    %v574 = vadd.f32 %v569, 1.0
    %v575 = vadd.f32 %v571, 1.0
    %v576 = vrcp.pop %v572
    %v577 = vmul.f32 %v572, %v576
    %v578 = vsub.f32 1.0, %v577
    %v579 = vmul.f32 %v576, %v578
    %v580 = vadd.f32 %v576, %v579
    %vm581 = vweird.f32 %v572
    %vm582 = vweird.f32 %v576
    %vm583 = vmor %vm581, %vm582
    %v584 = vsel %vm583, %v576, %v580
    %v585 = vand.u32 2147483647, %v572
    %vm586 = vcmp.eq.f32.partialorder %v585, 8.507059e+37
    %v587 = vand.u32 %v572, 2147483648
    %v588 = vor.u32 1.1754944e-38, %v587
    %v589 = vsel %vm586, %v588, %v584
    %v590 = vmul.f32 1.0, %v589
    %v591 = vrcp.pop %v573
    %v592 = vmul.f32 %v573, %v591
    %v593 = vsub.f32 1.0, %v592
    %v594 = vmul.f32 %v591, %v593
    %v595 = vadd.f32 %v591, %v594
    %vm596 = vweird.f32 %v573
    %vm597 = vweird.f32 %v591
    %vm598 = vmor %vm596, %vm597
    %v599 = vsel %vm598, %v591, %v595
    %v600 = vand.u32 2147483647, %v573
    %vm601 = vcmp.eq.f32.partialorder %v600, 8.507059e+37
    %v602 = vand.u32 %v573, 2147483648
    %v603 = vor.u32 1.1754944e-38, %v602
    %v604 = vsel %vm601, %v603, %v599
    %v605 = vmul.f32 1.0, %v604
    %v606 = vrcp.pop %v574
    %v607 = vmul.f32 %v574, %v606
    %v608 = vsub.f32 1.0, %v607
    %v609 = vmul.f32 %v606, %v608
    %v610 = vadd.f32 %v606, %v609
    %vm611 = vweird.f32 %v574
    %vm612 = vweird.f32 %v606
    %vm613 = vmor %vm611, %vm612
    %v614 = vsel %vm613, %v606, %v610
    %v615 = vand.u32 2147483647, %v574
    %vm616 = vcmp.eq.f32.partialorder %v615, 8.507059e+37
    %v617 = vand.u32 %v574, 2147483648
    %v618 = vor.u32 1.1754944e-38, %v617
    %v619 = vsel %vm616, %v618, %v614
    %v620 = vmul.f32 1.0, %v619
    %v621 = vrcp.pop %v575
    %v622 = vmul.f32 %v575, %v621
    %v623 = vsub.f32 1.0, %v622
    %v624 = vmul.f32 %v621, %v623
    %v625 = vadd.f32 %v621, %v624
    %vm626 = vweird.f32 %v575
    %vm627 = vweird.f32 %v621
    %vm628 = vmor %vm626, %vm627
    %v629 = vsel %vm628, %v621, %v625
    %v630 = vand.u32 2147483647, %v575
    %vm631 = vcmp.eq.f32.partialorder %v630, 8.507059e+37
    %v632 = vand.u32 %v575, 2147483648
    %v633 = vor.u32 1.1754944e-38, %v632
    %v634 = vsel %vm631, %v633, %v629
    %v635 = vmul.f32 1.0, %v634
    %v636 = vadd.f32 %v551, %v475
    %v637 = vadd.f32 %v554, %v475
    %v638 = vmul.f32 %v590, %v636
    %v639 = vmul.f32 %v620, %v637
    %v640 = vadd.f32 %v479, %v638
    %v641 = vadd.f32 %v482, %v639
    %v642 = vtanh.pop %v640
    %v643 = vtanh.pop %v641
    %v644 = vsub.f32 0.0, %v642
    %v645 = vsub.f32 0.0, %v643
    %v646 = vmul.f32 %v605, %v644
    %v647 = vmul.f32 %v635, %v645
    %v648 = vadd.f32 %v642, %v646
    %v649 = vadd.f32 %v643, %v647
    %vm650 = vcmp.gt.s32.totalorder %v469, 0
    %vm651 = vcmp.gt.s32.totalorder %v472, 0
    %v652 = vsel %vm650, %v648, 0.0
    %v653 = vsel %vm651, %v649, 0.0
    %v654 = vld [vmem:[#allocation2 + $0x30] sm:$0xff]
    %v655 = vld [vmem:[#allocation2 + $0x38] sm:$0xff]
    %v656 = vld [vmem:[#allocation2 + $0x40] sm:$0xff]
    %v657 = vld [vmem:[#allocation2 + $0x48] sm:$0xff]
    %v658 = vld [vmem:[#allocation2 + $0x50] sm:$0xff]
    %v659 = vld [vmem:[#allocation2 + $0x58] sm:$0xff]
    %v661 = vsel %vm483, %v652, 0
    %v664 = vsel %vm483, %v653, 0
    %666 = vmatpush.msra.mxu0 0.0
    %667 = vmatpush.msra.mxu0 0.0
    %668 = vmatpush.msra.mxu0 0.0
    %669 = vmatpush.msra.mxu0 0.0
    %670 = vmatpush.msra.mxu0 0.0
    %671 = vmatpush.msra.mxu0 0.0
    %672 = vmatpush.msra.mxu0 0.0
    %673 = vmatpush.msra.mxu0 0.0
    %674 = vmatpush.msra.mxu0 0.0
    %675 = vmatpush.msra.mxu0 0.0
    %676 = vmatpush.msra.mxu0 0.0
    %677 = vmatpush.msra.mxu0 0.0
    %678 = vmatpush.msra.mxu0 %v462
    %679 = vmatpush.msra.mxu0 %v459
    %680 = vmatpush.msra.mxu0 %v456
    %681 = vmatpush.msra.mxu0 %v453
    %682 = vmatmul.f32.gmra.mxu0 %v661
    %v683 = vpop.f32.mrf.mxu0
    %v684 = vadd.f32 0.0, %v683
    %685 = vmatmul.f32.gmra.mxu0 %v664
    %v686 = vpop.f32.mrf.mxu0
    %v687 = vadd.f32 0.0, %v686
    %688 = vdwg.mxu0
    %689 = vmatpush.msra.mxu0 0.0
    %690 = vmatpush.msra.mxu0 0.0
    %691 = vmatpush.msra.mxu0 0.0
    %692 = vmatpush.msra.mxu0 0.0
    %693 = vmatpush.msra.mxu0 0.0
    %694 = vmatpush.msra.mxu0 0.0
    %695 = vmatpush.msra.mxu0 0.0
    %696 = vmatpush.msra.mxu0 0.0
    %697 = vmatpush.msra.mxu0 0.0
    %698 = vmatpush.msra.mxu0 0.0
    %699 = vmatpush.msra.mxu0 0.0
    %700 = vmatpush.msra.mxu0 0.0
    %701 = vmatpush.msra.mxu0 %v463
    %702 = vmatpush.msra.mxu0 %v460
    %703 = vmatpush.msra.mxu0 %v457
    %704 = vmatpush.msra.mxu0 %v454
    %705 = vmatmul.f32.gmra.mxu0 %v661
    %v706 = vpop.f32.mrf.mxu0
    %v707 = vadd.f32 0.0, %v706
    %708 = vmatmul.f32.gmra.mxu0 %v664
    %v709 = vpop.f32.mrf.mxu0
    %v710 = vadd.f32 0.0, %v709
    %711 = vdwg.mxu0
    %712 = vmatpush.msra.mxu0 0.0
    %713 = vmatpush.msra.mxu0 0.0
    %714 = vmatpush.msra.mxu0 0.0
    %715 = vmatpush.msra.mxu0 0.0
    %716 = vmatpush.msra.mxu0 0.0
    %717 = vmatpush.msra.mxu0 0.0
    %718 = vmatpush.msra.mxu0 0.0
    %719 = vmatpush.msra.mxu0 0.0
    %720 = vmatpush.msra.mxu0 0.0
    %721 = vmatpush.msra.mxu0 0.0
    %722 = vmatpush.msra.mxu0 0.0
    %723 = vmatpush.msra.mxu0 0.0
    %724 = vmatpush.msra.mxu0 %v464
    %725 = vmatpush.msra.mxu0 %v461
    %726 = vmatpush.msra.mxu0 %v458
    %727 = vmatpush.msra.mxu0 %v455
    %728 = vmatmul.f32.gmra.mxu0 %v661
    %v729 = vpop.f32.mrf.mxu0
    %v730 = vadd.f32 0.0, %v729
    %731 = vmatmul.f32.gmra.mxu0 %v664
    %v732 = vpop.f32.mrf.mxu0
    %v733 = vadd.f32 0.0, %v732
    %734 = vdwg.mxu0
    %v735 = vadd.f32 %v654, %v684
    %v736 = vadd.f32 %v655, %v707
    %v737 = vadd.f32 %v657, %v687
    %v738 = vadd.f32 %v658, %v710
    %v739 = vxor.u32 %v735, 2147483648
    %v740 = vxor.u32 %v736, 2147483648
    %v741 = vxor.u32 %v737, 2147483648
    %v742 = vxor.u32 %v738, 2147483648
    %v743 = vmul.f32 %v739, 1.442695
    %v744 = vpow.pop %v743
    %v745 = vmul.f32 %v740, 1.442695
    %v746 = vpow.pop %v745
    %v747 = vmul.f32 %v741, 1.442695
    %v748 = vpow.pop %v747
    %v749 = vmul.f32 %v742, 1.442695
    %v750 = vpow.pop %v749
    %v751 = vadd.f32 %v744, 1.0
    %v752 = vadd.f32 %v746, 1.0
    %v753 = vadd.f32 %v748, 1.0
    %v754 = vadd.f32 %v750, 1.0
    %v755 = vrcp.pop %v751
    %v756 = vmul.f32 %v751, %v755
    %v757 = vsub.f32 1.0, %v756
    %v758 = vmul.f32 %v755, %v757
    %v759 = vadd.f32 %v755, %v758
    %vm760 = vweird.f32 %v751
    %vm761 = vweird.f32 %v755
    %vm762 = vmor %vm760, %vm761
    %v763 = vsel %vm762, %v755, %v759
    %v764 = vand.u32 2147483647, %v751
    %vm765 = vcmp.eq.f32.partialorder %v764, 8.507059e+37
    %v766 = vand.u32 %v751, 2147483648
    %v767 = vor.u32 1.1754944e-38, %v766
    %v768 = vsel %vm765, %v767, %v763
    %v769 = vmul.f32 1.0, %v768
    %v770 = vrcp.pop %v752
    %v771 = vmul.f32 %v752, %v770
    %v772 = vsub.f32 1.0, %v771
    %v773 = vmul.f32 %v770, %v772
    %v774 = vadd.f32 %v770, %v773
    %vm775 = vweird.f32 %v752
    %vm776 = vweird.f32 %v770
    %vm777 = vmor %vm775, %vm776
    %v778 = vsel %vm777, %v770, %v774
    %v779 = vand.u32 2147483647, %v752
    %vm780 = vcmp.eq.f32.partialorder %v779, 8.507059e+37
    %v781 = vand.u32 %v752, 2147483648
    %v782 = vor.u32 1.1754944e-38, %v781
    %v783 = vsel %vm780, %v782, %v778
    %v784 = vmul.f32 1.0, %v783
    %v785 = vrcp.pop %v753
    %v786 = vmul.f32 %v753, %v785
    %v787 = vsub.f32 1.0, %v786
    %v788 = vmul.f32 %v785, %v787
    %v789 = vadd.f32 %v785, %v788
    %vm790 = vweird.f32 %v753
    %vm791 = vweird.f32 %v785
    %vm792 = vmor %vm790, %vm791
    %v793 = vsel %vm792, %v785, %v789
    %v794 = vand.u32 2147483647, %v753
    %vm795 = vcmp.eq.f32.partialorder %v794, 8.507059e+37
    %v796 = vand.u32 %v753, 2147483648
    %v797 = vor.u32 1.1754944e-38, %v796
    %v798 = vsel %vm795, %v797, %v793
    %v799 = vmul.f32 1.0, %v798
    %v800 = vrcp.pop %v754
    %v801 = vmul.f32 %v754, %v800
    %v802 = vsub.f32 1.0, %v801
    %v803 = vmul.f32 %v800, %v802
    %v804 = vadd.f32 %v800, %v803
    %vm805 = vweird.f32 %v754
    %vm806 = vweird.f32 %v800
    %vm807 = vmor %vm805, %vm806
    %v808 = vsel %vm807, %v800, %v804
    %v809 = vand.u32 2147483647, %v754
    %vm810 = vcmp.eq.f32.partialorder %v809, 8.507059e+37
    %v811 = vand.u32 %v754, 2147483648
    %v812 = vor.u32 1.1754944e-38, %v811
    %v813 = vsel %vm810, %v812, %v808
    %v814 = vmul.f32 1.0, %v813
    %v815 = vadd.f32 %v730, %v475
    %v816 = vadd.f32 %v733, %v475
    %v817 = vmul.f32 %v769, %v815
    %v818 = vmul.f32 %v799, %v816
    %v819 = vadd.f32 %v656, %v817
    %v820 = vadd.f32 %v659, %v818
    %v821 = vtanh.pop %v819
    %v822 = vtanh.pop %v820
    %v823 = vsub.f32 %v652, %v821
    %v824 = vsub.f32 %v653, %v822
    %v825 = vmul.f32 %v784, %v823
    %v826 = vmul.f32 %v814, %v824
    %v827 = vadd.f32 %v821, %v825
    %v828 = vadd.f32 %v822, %v826
    %vm829 = vcmp.gt.s32.totalorder %v469, 1
    %vm830 = vcmp.gt.s32.totalorder %v472, 1
    %v831 = vsel %vm829, %v827, %v652
    %v832 = vsel %vm830, %v828, %v653
    %v833 = vld [vmem:[#allocation2 + $0x60] sm:$0xff]
    %v834 = vld [vmem:[#allocation2 + $0x68] sm:$0xff]
    %v835 = vld [vmem:[#allocation2 + $0x70] sm:$0xff]
    %v836 = vld [vmem:[#allocation2 + $0x78] sm:$0xff]
    %v837 = vld [vmem:[#allocation2 + $0x80] sm:$0xff]
    %v838 = vld [vmem:[#allocation2 + $0x88] sm:$0xff]
    %v840 = vsel %vm483, %v831, 0
    %v843 = vsel %vm483, %v832, 0
    %845 = vmatpush.msra.mxu0 0.0
    %846 = vmatpush.msra.mxu0 0.0
    %847 = vmatpush.msra.mxu0 0.0
    %848 = vmatpush.msra.mxu0 0.0
    %849 = vmatpush.msra.mxu0 0.0
    %850 = vmatpush.msra.mxu0 0.0
    %851 = vmatpush.msra.mxu0 0.0
    %852 = vmatpush.msra.mxu0 0.0
    %853 = vmatpush.msra.mxu0 0.0
    %854 = vmatpush.msra.mxu0 0.0
    %855 = vmatpush.msra.mxu0 0.0
    %856 = vmatpush.msra.mxu0 0.0
    %857 = vmatpush.msra.mxu0 %v462
    %858 = vmatpush.msra.mxu0 %v459
    %859 = vmatpush.msra.mxu0 %v456
    %860 = vmatpush.msra.mxu0 %v453
    %861 = vmatmul.f32.gmra.mxu0 %v840
    %v862 = vpop.f32.mrf.mxu0
    %v863 = vadd.f32 0.0, %v862
    %864 = vmatmul.f32.gmra.mxu0 %v843
    %v865 = vpop.f32.mrf.mxu0
    %v866 = vadd.f32 0.0, %v865
    %867 = vdwg.mxu0
    %868 = vmatpush.msra.mxu0 0.0
    %869 = vmatpush.msra.mxu0 0.0
    %870 = vmatpush.msra.mxu0 0.0
    %871 = vmatpush.msra.mxu0 0.0
    %872 = vmatpush.msra.mxu0 0.0
    %873 = vmatpush.msra.mxu0 0.0
    %874 = vmatpush.msra.mxu0 0.0
    %875 = vmatpush.msra.mxu0 0.0
    %876 = vmatpush.msra.mxu0 0.0
    %877 = vmatpush.msra.mxu0 0.0
    %878 = vmatpush.msra.mxu0 0.0
    %879 = vmatpush.msra.mxu0 0.0
    %880 = vmatpush.msra.mxu0 %v463
    %881 = vmatpush.msra.mxu0 %v460
    %882 = vmatpush.msra.mxu0 %v457
    %883 = vmatpush.msra.mxu0 %v454
    %884 = vmatmul.f32.gmra.mxu0 %v840
    %v885 = vpop.f32.mrf.mxu0
    %v886 = vadd.f32 0.0, %v885
    %887 = vmatmul.f32.gmra.mxu0 %v843
    %v888 = vpop.f32.mrf.mxu0
    %v889 = vadd.f32 0.0, %v888
    %890 = vdwg.mxu0
    %891 = vmatpush.msra.mxu0 0.0
    %892 = vmatpush.msra.mxu0 0.0
    %893 = vmatpush.msra.mxu0 0.0
    %894 = vmatpush.msra.mxu0 0.0
    %895 = vmatpush.msra.mxu0 0.0
    %896 = vmatpush.msra.mxu0 0.0
    %897 = vmatpush.msra.mxu0 0.0
    %898 = vmatpush.msra.mxu0 0.0
    %899 = vmatpush.msra.mxu0 0.0
    %900 = vmatpush.msra.mxu0 0.0
    %901 = vmatpush.msra.mxu0 0.0
    %902 = vmatpush.msra.mxu0 0.0
    %903 = vmatpush.msra.mxu0 %v464
    %904 = vmatpush.msra.mxu0 %v461
    %905 = vmatpush.msra.mxu0 %v458
    %906 = vmatpush.msra.mxu0 %v455
    %907 = vmatmul.f32.gmra.mxu0 %v840
    %v908 = vpop.f32.mrf.mxu0
    %v909 = vadd.f32 0.0, %v908
    %910 = vmatmul.f32.gmra.mxu0 %v843
    %v911 = vpop.f32.mrf.mxu0
    %v912 = vadd.f32 0.0, %v911
    %913 = vdwg.mxu0
    %v914 = vadd.f32 %v833, %v863
    %v915 = vadd.f32 %v834, %v886
    %v916 = vadd.f32 %v836, %v866
    %v917 = vadd.f32 %v837, %v889
    %v918 = vxor.u32 %v914, 2147483648
    %v919 = vxor.u32 %v915, 2147483648
    %v920 = vxor.u32 %v916, 2147483648
    %v921 = vxor.u32 %v917, 2147483648
    %v922 = vmul.f32 %v918, 1.442695
    %v923 = vpow.pop %v922
    %v924 = vmul.f32 %v919, 1.442695
    %v925 = vpow.pop %v924
    %v926 = vmul.f32 %v920, 1.442695
    %v927 = vpow.pop %v926
    %v928 = vmul.f32 %v921, 1.442695
    %v929 = vpow.pop %v928
    %v930 = vadd.f32 %v923, 1.0
    %v931 = vadd.f32 %v925, 1.0
    %v932 = vadd.f32 %v927, 1.0
    %v933 = vadd.f32 %v929, 1.0
    %v934 = vrcp.pop %v930
    %v935 = vmul.f32 %v930, %v934
    %v936 = vsub.f32 1.0, %v935
    %v937 = vmul.f32 %v934, %v936
    %v938 = vadd.f32 %v934, %v937
    %vm939 = vweird.f32 %v930
    %vm940 = vweird.f32 %v934
    %vm941 = vmor %vm939, %vm940
    %v942 = vsel %vm941, %v934, %v938
    %v943 = vand.u32 2147483647, %v930
    %vm944 = vcmp.eq.f32.partialorder %v943, 8.507059e+37
    %v945 = vand.u32 %v930, 2147483648
    %v946 = vor.u32 1.1754944e-38, %v945
    %v947 = vsel %vm944, %v946, %v942
    %v948 = vmul.f32 1.0, %v947
    %v949 = vrcp.pop %v931
    %v950 = vmul.f32 %v931, %v949
    %v951 = vsub.f32 1.0, %v950
    %v952 = vmul.f32 %v949, %v951
    %v953 = vadd.f32 %v949, %v952
    %vm954 = vweird.f32 %v931
    %vm955 = vweird.f32 %v949
    %vm956 = vmor %vm954, %vm955
    %v957 = vsel %vm956, %v949, %v953
    %v958 = vand.u32 2147483647, %v931
    %vm959 = vcmp.eq.f32.partialorder %v958, 8.507059e+37
    %v960 = vand.u32 %v931, 2147483648
    %v961 = vor.u32 1.1754944e-38, %v960
    %v962 = vsel %vm959, %v961, %v957
    %v963 = vmul.f32 1.0, %v962
    %v964 = vrcp.pop %v932
    %v965 = vmul.f32 %v932, %v964
    %v966 = vsub.f32 1.0, %v965
    %v967 = vmul.f32 %v964, %v966
    %v968 = vadd.f32 %v964, %v967
    %vm969 = vweird.f32 %v932
    %vm970 = vweird.f32 %v964
    %vm971 = vmor %vm969, %vm970
    %v972 = vsel %vm971, %v964, %v968
    %v973 = vand.u32 2147483647, %v932
    %vm974 = vcmp.eq.f32.partialorder %v973, 8.507059e+37
    %v975 = vand.u32 %v932, 2147483648
    %v976 = vor.u32 1.1754944e-38, %v975
    %v977 = vsel %vm974, %v976, %v972
    %v978 = vmul.f32 1.0, %v977
    %v979 = vrcp.pop %v933
    %v980 = vmul.f32 %v933, %v979
    %v981 = vsub.f32 1.0, %v980
    %v982 = vmul.f32 %v979, %v981
    %v983 = vadd.f32 %v979, %v982
    %vm984 = vweird.f32 %v933
    %vm985 = vweird.f32 %v979
    %vm986 = vmor %vm984, %vm985
    %v987 = vsel %vm986, %v979, %v983
    %v988 = vand.u32 2147483647, %v933
    %vm989 = vcmp.eq.f32.partialorder %v988, 8.507059e+37
    %v990 = vand.u32 %v933, 2147483648
    %v991 = vor.u32 1.1754944e-38, %v990
    %v992 = vsel %vm989, %v991, %v987
    %v993 = vmul.f32 1.0, %v992
    %v994 = vadd.f32 %v909, %v475
    %v995 = vadd.f32 %v912, %v475
    %v996 = vmul.f32 %v948, %v994
    %v997 = vmul.f32 %v978, %v995
    %v998 = vadd.f32 %v835, %v996
    %v999 = vadd.f32 %v838, %v997
    %v1000 = vtanh.pop %v998
    %v1001 = vtanh.pop %v999
    %v1002 = vsub.f32 %v831, %v1000
    %v1003 = vsub.f32 %v832, %v1001
    %v1004 = vmul.f32 %v963, %v1002
    %v1005 = vmul.f32 %v993, %v1003
    %v1006 = vadd.f32 %v1000, %v1004
    %v1007 = vadd.f32 %v1001, %v1005
    %vm1008 = vcmp.gt.s32.totalorder %v469, 2
    %vm1009 = vcmp.gt.s32.totalorder %v472, 2
    %v1010 = vsel %vm1008, %v1006, %v831
    %v1011 = vsel %vm1009, %v1007, %v832
    %v1012 = vld [vmem:[#allocation2 + $0x90] sm:$0xff]
    %v1013 = vld [vmem:[#allocation2 + $0x98] sm:$0xff]
    %v1014 = vld [vmem:[#allocation2 + $0xa0] sm:$0xff]
    %v1015 = vld [vmem:[#allocation2 + $0xa8] sm:$0xff]
    %v1016 = vld [vmem:[#allocation2 + $0xb0] sm:$0xff]
    %v1017 = vld [vmem:[#allocation2 + $0xb8] sm:$0xff]
    %v1019 = vsel %vm483, %v1010, 0
    %v1022 = vsel %vm483, %v1011, 0
    %1024 = vmatpush.msra.mxu0 0.0
    %1025 = vmatpush.msra.mxu0 0.0
    %1026 = vmatpush.msra.mxu0 0.0
    %1027 = vmatpush.msra.mxu0 0.0
    %1028 = vmatpush.msra.mxu0 0.0
    %1029 = vmatpush.msra.mxu0 0.0
    %1030 = vmatpush.msra.mxu0 0.0
    %1031 = vmatpush.msra.mxu0 0.0
    %1032 = vmatpush.msra.mxu0 0.0
    %1033 = vmatpush.msra.mxu0 0.0
    %1034 = vmatpush.msra.mxu0 0.0
    %1035 = vmatpush.msra.mxu0 0.0
    %1036 = vmatpush.msra.mxu0 %v462
    %1037 = vmatpush.msra.mxu0 %v459
    %1038 = vmatpush.msra.mxu0 %v456
    %1039 = vmatpush.msra.mxu0 %v453
    %1040 = vmatmul.f32.gmra.mxu0 %v1019
    %v1041 = vpop.f32.mrf.mxu0
    %v1042 = vadd.f32 0.0, %v1041
    %1043 = vmatmul.f32.gmra.mxu0 %v1022
    %v1044 = vpop.f32.mrf.mxu0
    %v1045 = vadd.f32 0.0, %v1044
    %1046 = vdwg.mxu0
    %1047 = vmatpush.msra.mxu0 0.0
    %1048 = vmatpush.msra.mxu0 0.0
    %1049 = vmatpush.msra.mxu0 0.0
    %1050 = vmatpush.msra.mxu0 0.0
    %1051 = vmatpush.msra.mxu0 0.0
    %1052 = vmatpush.msra.mxu0 0.0
    %1053 = vmatpush.msra.mxu0 0.0
    %1054 = vmatpush.msra.mxu0 0.0
    %1055 = vmatpush.msra.mxu0 0.0
    %1056 = vmatpush.msra.mxu0 0.0
    %1057 = vmatpush.msra.mxu0 0.0
    %1058 = vmatpush.msra.mxu0 0.0
    %1059 = vmatpush.msra.mxu0 %v463
    %1060 = vmatpush.msra.mxu0 %v460
    %1061 = vmatpush.msra.mxu0 %v457
    %1062 = vmatpush.msra.mxu0 %v454
    %1063 = vmatmul.f32.gmra.mxu0 %v1019
    %v1064 = vpop.f32.mrf.mxu0
    %v1065 = vadd.f32 0.0, %v1064
    %1066 = vmatmul.f32.gmra.mxu0 %v1022
    %v1067 = vpop.f32.mrf.mxu0
    %v1068 = vadd.f32 0.0, %v1067
    %1069 = vdwg.mxu0
    %1070 = vmatpush.msra.mxu0 0.0
    %1071 = vmatpush.msra.mxu0 0.0
    %1072 = vmatpush.msra.mxu0 0.0
    %1073 = vmatpush.msra.mxu0 0.0
    %1074 = vmatpush.msra.mxu0 0.0
    %1075 = vmatpush.msra.mxu0 0.0
    %1076 = vmatpush.msra.mxu0 0.0
    %1077 = vmatpush.msra.mxu0 0.0
    %1078 = vmatpush.msra.mxu0 0.0
    %1079 = vmatpush.msra.mxu0 0.0
    %1080 = vmatpush.msra.mxu0 0.0
    %1081 = vmatpush.msra.mxu0 0.0
    %1082 = vmatpush.msra.mxu0 %v464
    %1083 = vmatpush.msra.mxu0 %v461
    %1084 = vmatpush.msra.mxu0 %v458
    %1085 = vmatpush.msra.mxu0 %v455
    %1086 = vmatmul.f32.gmra.mxu0 %v1019
    %v1087 = vpop.f32.mrf.mxu0
    %v1088 = vadd.f32 0.0, %v1087
    %1089 = vmatmul.f32.gmra.mxu0 %v1022
    %v1090 = vpop.f32.mrf.mxu0
    %v1091 = vadd.f32 0.0, %v1090
    %1092 = vdwg.mxu0
    %v1093 = vadd.f32 %v1012, %v1042
    %v1094 = vadd.f32 %v1013, %v1065
    %v1095 = vadd.f32 %v1015, %v1045
    %v1096 = vadd.f32 %v1016, %v1068
    %v1097 = vxor.u32 %v1093, 2147483648
    %v1098 = vxor.u32 %v1094, 2147483648
    %v1099 = vxor.u32 %v1095, 2147483648
    %v1100 = vxor.u32 %v1096, 2147483648
    %v1101 = vmul.f32 %v1097, 1.442695
    %v1102 = vpow.pop %v1101
    %v1103 = vmul.f32 %v1098, 1.442695
    %v1104 = vpow.pop %v1103
    %v1105 = vmul.f32 %v1099, 1.442695
    %v1106 = vpow.pop %v1105
    %v1107 = vmul.f32 %v1100, 1.442695
    %v1108 = vpow.pop %v1107
    %v1109 = vadd.f32 %v1102, 1.0
    %v1110 = vadd.f32 %v1104, 1.0
    %v1111 = vadd.f32 %v1106, 1.0
    %v1112 = vadd.f32 %v1108, 1.0
    %v1113 = vrcp.pop %v1109
    %v1114 = vmul.f32 %v1109, %v1113
    %v1115 = vsub.f32 1.0, %v1114
    %v1116 = vmul.f32 %v1113, %v1115
    %v1117 = vadd.f32 %v1113, %v1116
    %vm1118 = vweird.f32 %v1109
    %vm1119 = vweird.f32 %v1113
    %vm1120 = vmor %vm1118, %vm1119
    %v1121 = vsel %vm1120, %v1113, %v1117
    %v1122 = vand.u32 2147483647, %v1109
    %vm1123 = vcmp.eq.f32.partialorder %v1122, 8.507059e+37
    %v1124 = vand.u32 %v1109, 2147483648
    %v1125 = vor.u32 1.1754944e-38, %v1124
    %v1126 = vsel %vm1123, %v1125, %v1121
    %v1127 = vmul.f32 1.0, %v1126
    %v1128 = vrcp.pop %v1110
    %v1129 = vmul.f32 %v1110, %v1128
    %v1130 = vsub.f32 1.0, %v1129
    %v1131 = vmul.f32 %v1128, %v1130
    %v1132 = vadd.f32 %v1128, %v1131
    %vm1133 = vweird.f32 %v1110
    %vm1134 = vweird.f32 %v1128
    %vm1135 = vmor %vm1133, %vm1134
    %v1136 = vsel %vm1135, %v1128, %v1132
    %v1137 = vand.u32 2147483647, %v1110
    %vm1138 = vcmp.eq.f32.partialorder %v1137, 8.507059e+37
    %v1139 = vand.u32 %v1110, 2147483648
    %v1140 = vor.u32 1.1754944e-38, %v1139
    %v1141 = vsel %vm1138, %v1140, %v1136
    %v1142 = vmul.f32 1.0, %v1141
    %v1143 = vrcp.pop %v1111
    %v1144 = vmul.f32 %v1111, %v1143
    %v1145 = vsub.f32 1.0, %v1144
    %v1146 = vmul.f32 %v1143, %v1145
    %v1147 = vadd.f32 %v1143, %v1146
    %vm1148 = vweird.f32 %v1111
    %vm1149 = vweird.f32 %v1143
    %vm1150 = vmor %vm1148, %vm1149
    %v1151 = vsel %vm1150, %v1143, %v1147
    %v1152 = vand.u32 2147483647, %v1111
    %vm1153 = vcmp.eq.f32.partialorder %v1152, 8.507059e+37
    %v1154 = vand.u32 %v1111, 2147483648
    %v1155 = vor.u32 1.1754944e-38, %v1154
    %v1156 = vsel %vm1153, %v1155, %v1151
    %v1157 = vmul.f32 1.0, %v1156
    %v1158 = vrcp.pop %v1112
    %v1159 = vmul.f32 %v1112, %v1158
    %v1160 = vsub.f32 1.0, %v1159
    %v1161 = vmul.f32 %v1158, %v1160
    %v1162 = vadd.f32 %v1158, %v1161
    %vm1163 = vweird.f32 %v1112
    %vm1164 = vweird.f32 %v1158
    %vm1165 = vmor %vm1163, %vm1164
    %v1166 = vsel %vm1165, %v1158, %v1162
    %v1167 = vand.u32 2147483647, %v1112
    %vm1168 = vcmp.eq.f32.partialorder %v1167, 8.507059e+37
    %v1169 = vand.u32 %v1112, 2147483648
    %v1170 = vor.u32 1.1754944e-38, %v1169
    %v1171 = vsel %vm1168, %v1170, %v1166
    %v1172 = vmul.f32 1.0, %v1171
    %v1173 = vadd.f32 %v1088, %v475
    %v1174 = vadd.f32 %v1091, %v475
    %v1175 = vmul.f32 %v1127, %v1173
    %v1176 = vmul.f32 %v1157, %v1174
    %v1177 = vadd.f32 %v1014, %v1175
    %v1178 = vadd.f32 %v1017, %v1176
    %v1179 = vtanh.pop %v1177
    %v1180 = vtanh.pop %v1178
    %v1181 = vsub.f32 %v1010, %v1179
    %v1182 = vsub.f32 %v1011, %v1180
    %v1183 = vmul.f32 %v1142, %v1181
    %v1184 = vmul.f32 %v1172, %v1182
    %v1185 = vadd.f32 %v1179, %v1183
    %v1186 = vadd.f32 %v1180, %v1184
    %vm1187 = vcmp.gt.s32.totalorder %v469, 3
    %vm1188 = vcmp.gt.s32.totalorder %v472, 3
    %v1189 = vsel %vm1187, %v1185, %v1010
    %v1190 = vsel %vm1188, %v1186, %v1011
    %v1191 = vld [vmem:[#allocation2 + $0xc0] sm:$0xff]
    %v1192 = vld [vmem:[#allocation2 + $0xc8] sm:$0xff]
    %v1193 = vld [vmem:[#allocation2 + $0xd0] sm:$0xff]
    %v1194 = vld [vmem:[#allocation2 + $0xd8] sm:$0xff]
    %v1195 = vld [vmem:[#allocation2 + $0xe0] sm:$0xff]
    %v1196 = vld [vmem:[#allocation2 + $0xe8] sm:$0xff]
    %v1198 = vsel %vm483, %v1189, 0
    %v1201 = vsel %vm483, %v1190, 0
    %1203 = vmatpush.msra.mxu0 0.0
    %1204 = vmatpush.msra.mxu0 0.0
    %1205 = vmatpush.msra.mxu0 0.0
    %1206 = vmatpush.msra.mxu0 0.0
    %1207 = vmatpush.msra.mxu0 0.0
    %1208 = vmatpush.msra.mxu0 0.0
    %1209 = vmatpush.msra.mxu0 0.0
    %1210 = vmatpush.msra.mxu0 0.0
    %1211 = vmatpush.msra.mxu0 0.0
    %1212 = vmatpush.msra.mxu0 0.0
    %1213 = vmatpush.msra.mxu0 0.0
    %1214 = vmatpush.msra.mxu0 0.0
    %1215 = vmatpush.msra.mxu0 %v462
    %1216 = vmatpush.msra.mxu0 %v459
    %1217 = vmatpush.msra.mxu0 %v456
    %1218 = vmatpush.msra.mxu0 %v453
    %1219 = vmatmul.f32.gmra.mxu0 %v1198
    %v1220 = vpop.f32.mrf.mxu0
    %v1221 = vadd.f32 0.0, %v1220
    %1222 = vmatmul.f32.gmra.mxu0 %v1201
    %v1223 = vpop.f32.mrf.mxu0
    %v1224 = vadd.f32 0.0, %v1223
    %1225 = vdwg.mxu0
    %1226 = vmatpush.msra.mxu0 0.0
    %1227 = vmatpush.msra.mxu0 0.0
    %1228 = vmatpush.msra.mxu0 0.0
    %1229 = vmatpush.msra.mxu0 0.0
    %1230 = vmatpush.msra.mxu0 0.0
    %1231 = vmatpush.msra.mxu0 0.0
    %1232 = vmatpush.msra.mxu0 0.0
    %1233 = vmatpush.msra.mxu0 0.0
    %1234 = vmatpush.msra.mxu0 0.0
    %1235 = vmatpush.msra.mxu0 0.0
    %1236 = vmatpush.msra.mxu0 0.0
    %1237 = vmatpush.msra.mxu0 0.0
    %1238 = vmatpush.msra.mxu0 %v463
    %1239 = vmatpush.msra.mxu0 %v460
    %1240 = vmatpush.msra.mxu0 %v457
    %1241 = vmatpush.msra.mxu0 %v454
    %1242 = vmatmul.f32.gmra.mxu0 %v1198
    %v1243 = vpop.f32.mrf.mxu0
    %v1244 = vadd.f32 0.0, %v1243
    %1245 = vmatmul.f32.gmra.mxu0 %v1201
    %v1246 = vpop.f32.mrf.mxu0
    %v1247 = vadd.f32 0.0, %v1246
    %1248 = vdwg.mxu0
    %1249 = vmatpush.msra.mxu0 0.0
    %1250 = vmatpush.msra.mxu0 0.0
    %1251 = vmatpush.msra.mxu0 0.0
    %1252 = vmatpush.msra.mxu0 0.0
    %1253 = vmatpush.msra.mxu0 0.0
    %1254 = vmatpush.msra.mxu0 0.0
    %1255 = vmatpush.msra.mxu0 0.0
    %1256 = vmatpush.msra.mxu0 0.0
    %1257 = vmatpush.msra.mxu0 0.0
    %1258 = vmatpush.msra.mxu0 0.0
    %1259 = vmatpush.msra.mxu0 0.0
    %1260 = vmatpush.msra.mxu0 0.0
    %1261 = vmatpush.msra.mxu0 %v464
    %1262 = vmatpush.msra.mxu0 %v461
    %1263 = vmatpush.msra.mxu0 %v458
    %1264 = vmatpush.msra.mxu0 %v455
    %1265 = vmatmul.f32.gmra.mxu0 %v1198
    %v1266 = vpop.f32.mrf.mxu0
    %v1267 = vadd.f32 0.0, %v1266
    %1268 = vmatmul.f32.gmra.mxu0 %v1201
    %v1269 = vpop.f32.mrf.mxu0
    %v1270 = vadd.f32 0.0, %v1269
    %1271 = vdwg.mxu0
    %v1272 = vadd.f32 %v1191, %v1221
    %v1273 = vadd.f32 %v1192, %v1244
    %v1274 = vadd.f32 %v1194, %v1224
    %v1275 = vadd.f32 %v1195, %v1247
    %v1276 = vxor.u32 %v1272, 2147483648
    %v1277 = vxor.u32 %v1273, 2147483648
    %v1278 = vxor.u32 %v1274, 2147483648
    %v1279 = vxor.u32 %v1275, 2147483648
    %v1280 = vmul.f32 %v1276, 1.442695
    %v1281 = vpow.pop %v1280
    %v1282 = vmul.f32 %v1277, 1.442695
    %v1283 = vpow.pop %v1282
    %v1284 = vmul.f32 %v1278, 1.442695
    %v1285 = vpow.pop %v1284
    %v1286 = vmul.f32 %v1279, 1.442695
    %v1287 = vpow.pop %v1286
    %v1288 = vadd.f32 %v1281, 1.0
    %v1289 = vadd.f32 %v1283, 1.0
    %v1290 = vadd.f32 %v1285, 1.0
    %v1291 = vadd.f32 %v1287, 1.0
    %v1292 = vrcp.pop %v1288
    %v1293 = vmul.f32 %v1288, %v1292
    %v1294 = vsub.f32 1.0, %v1293
    %v1295 = vmul.f32 %v1292, %v1294
    %v1296 = vadd.f32 %v1292, %v1295
    %vm1297 = vweird.f32 %v1288
    %vm1298 = vweird.f32 %v1292
    %vm1299 = vmor %vm1297, %vm1298
    %v1300 = vsel %vm1299, %v1292, %v1296
    %v1301 = vand.u32 2147483647, %v1288
    %vm1302 = vcmp.eq.f32.partialorder %v1301, 8.507059e+37
    %v1303 = vand.u32 %v1288, 2147483648
    %v1304 = vor.u32 1.1754944e-38, %v1303
    %v1305 = vsel %vm1302, %v1304, %v1300
    %v1306 = vmul.f32 1.0, %v1305
    %v1307 = vrcp.pop %v1289
    %v1308 = vmul.f32 %v1289, %v1307
    %v1309 = vsub.f32 1.0, %v1308
    %v1310 = vmul.f32 %v1307, %v1309
    %v1311 = vadd.f32 %v1307, %v1310
    %vm1312 = vweird.f32 %v1289
    %vm1313 = vweird.f32 %v1307
    %vm1314 = vmor %vm1312, %vm1313
    %v1315 = vsel %vm1314, %v1307, %v1311
    %v1316 = vand.u32 2147483647, %v1289
    %vm1317 = vcmp.eq.f32.partialorder %v1316, 8.507059e+37
    %v1318 = vand.u32 %v1289, 2147483648
    %v1319 = vor.u32 1.1754944e-38, %v1318
    %v1320 = vsel %vm1317, %v1319, %v1315
    %v1321 = vmul.f32 1.0, %v1320
    %v1322 = vrcp.pop %v1290
    %v1323 = vmul.f32 %v1290, %v1322
    %v1324 = vsub.f32 1.0, %v1323
    %v1325 = vmul.f32 %v1322, %v1324
    %v1326 = vadd.f32 %v1322, %v1325
    %vm1327 = vweird.f32 %v1290
    %vm1328 = vweird.f32 %v1322
    %vm1329 = vmor %vm1327, %vm1328
    %v1330 = vsel %vm1329, %v1322, %v1326
    %v1331 = vand.u32 2147483647, %v1290
    %vm1332 = vcmp.eq.f32.partialorder %v1331, 8.507059e+37
    %v1333 = vand.u32 %v1290, 2147483648
    %v1334 = vor.u32 1.1754944e-38, %v1333
    %v1335 = vsel %vm1332, %v1334, %v1330
    %v1336 = vmul.f32 1.0, %v1335
    %v1337 = vrcp.pop %v1291
    %v1338 = vmul.f32 %v1291, %v1337
    %v1339 = vsub.f32 1.0, %v1338
    %v1340 = vmul.f32 %v1337, %v1339
    %v1341 = vadd.f32 %v1337, %v1340
    %vm1342 = vweird.f32 %v1291
    %vm1343 = vweird.f32 %v1337
    %vm1344 = vmor %vm1342, %vm1343
    %v1345 = vsel %vm1344, %v1337, %v1341
    %v1346 = vand.u32 2147483647, %v1291
    %vm1347 = vcmp.eq.f32.partialorder %v1346, 8.507059e+37
    %v1348 = vand.u32 %v1291, 2147483648
    %v1349 = vor.u32 1.1754944e-38, %v1348
    %v1350 = vsel %vm1347, %v1349, %v1345
    %v1351 = vmul.f32 1.0, %v1350
    %v1352 = vadd.f32 %v1267, %v475
    %v1353 = vadd.f32 %v1270, %v475
    %v1354 = vmul.f32 %v1306, %v1352
    %v1355 = vmul.f32 %v1336, %v1353
    %v1356 = vadd.f32 %v1193, %v1354
    %v1357 = vadd.f32 %v1196, %v1355
    %v1358 = vtanh.pop %v1356
    %v1359 = vtanh.pop %v1357
    %v1360 = vsub.f32 %v1189, %v1358
    %v1361 = vsub.f32 %v1190, %v1359
    %v1362 = vmul.f32 %v1321, %v1360
    %v1363 = vmul.f32 %v1351, %v1361
    %v1364 = vadd.f32 %v1358, %v1362
    %v1365 = vadd.f32 %v1359, %v1363
    %vm1366 = vcmp.gt.s32.totalorder %v469, 4
    %vm1367 = vcmp.gt.s32.totalorder %v472, 4
    %v1368 = vsel %vm1366, %v1364, %v1189
    %v1369 = vsel %vm1367, %v1365, %v1190
    %v1370 = vld [vmem:[#allocation2 + $0xf0] sm:$0xff]
    %v1371 = vld [vmem:[#allocation2 + $0xf8] sm:$0xff]
    %v1372 = vld [vmem:[#allocation2 + $0x100] sm:$0xff]
    %v1373 = vld [vmem:[#allocation2 + $0x108] sm:$0xff]
    %v1374 = vld [vmem:[#allocation2 + $0x110] sm:$0xff]
    %v1375 = vld [vmem:[#allocation2 + $0x118] sm:$0xff]
    %v1377 = vsel %vm483, %v1368, 0
    %v1380 = vsel %vm483, %v1369, 0
    %1382 = vmatpush.msra.mxu0 0.0
    %1383 = vmatpush.msra.mxu0 0.0
    %1384 = vmatpush.msra.mxu0 0.0
    %1385 = vmatpush.msra.mxu0 0.0
    %1386 = vmatpush.msra.mxu0 0.0
    %1387 = vmatpush.msra.mxu0 0.0
    %1388 = vmatpush.msra.mxu0 0.0
    %1389 = vmatpush.msra.mxu0 0.0
    %1390 = vmatpush.msra.mxu0 0.0
    %1391 = vmatpush.msra.mxu0 0.0
    %1392 = vmatpush.msra.mxu0 0.0
    %1393 = vmatpush.msra.mxu0 0.0
    %1394 = vmatpush.msra.mxu0 %v462
    %1395 = vmatpush.msra.mxu0 %v459
    %1396 = vmatpush.msra.mxu0 %v456
    %1397 = vmatpush.msra.mxu0 %v453
    %1398 = vmatmul.f32.gmra.mxu0 %v1377
    %v1399 = vpop.f32.mrf.mxu0
    %v1400 = vadd.f32 0.0, %v1399
    %1401 = vmatmul.f32.gmra.mxu0 %v1380
    %v1402 = vpop.f32.mrf.mxu0
    %v1403 = vadd.f32 0.0, %v1402
    %1404 = vdwg.mxu0
    %1405 = vmatpush.msra.mxu0 0.0
    %1406 = vmatpush.msra.mxu0 0.0
    %1407 = vmatpush.msra.mxu0 0.0
    %1408 = vmatpush.msra.mxu0 0.0
    %1409 = vmatpush.msra.mxu0 0.0
    %1410 = vmatpush.msra.mxu0 0.0
    %1411 = vmatpush.msra.mxu0 0.0
    %1412 = vmatpush.msra.mxu0 0.0
    %1413 = vmatpush.msra.mxu0 0.0
    %1414 = vmatpush.msra.mxu0 0.0
    %1415 = vmatpush.msra.mxu0 0.0
    %1416 = vmatpush.msra.mxu0 0.0
    %1417 = vmatpush.msra.mxu0 %v463
    %1418 = vmatpush.msra.mxu0 %v460
    %1419 = vmatpush.msra.mxu0 %v457
    %1420 = vmatpush.msra.mxu0 %v454
    %1421 = vmatmul.f32.gmra.mxu0 %v1377
    %v1422 = vpop.f32.mrf.mxu0
    %v1423 = vadd.f32 0.0, %v1422
    %1424 = vmatmul.f32.gmra.mxu0 %v1380
    %v1425 = vpop.f32.mrf.mxu0
    %v1426 = vadd.f32 0.0, %v1425
    %1427 = vdwg.mxu0
    %1428 = vmatpush.msra.mxu0 0.0
    %1429 = vmatpush.msra.mxu0 0.0
    %1430 = vmatpush.msra.mxu0 0.0
    %1431 = vmatpush.msra.mxu0 0.0
    %1432 = vmatpush.msra.mxu0 0.0
    %1433 = vmatpush.msra.mxu0 0.0
    %1434 = vmatpush.msra.mxu0 0.0
    %1435 = vmatpush.msra.mxu0 0.0
    %1436 = vmatpush.msra.mxu0 0.0
    %1437 = vmatpush.msra.mxu0 0.0
    %1438 = vmatpush.msra.mxu0 0.0
    %1439 = vmatpush.msra.mxu0 0.0
    %1440 = vmatpush.msra.mxu0 %v464
    %1441 = vmatpush.msra.mxu0 %v461
    %1442 = vmatpush.msra.mxu0 %v458
    %1443 = vmatpush.msra.mxu0 %v455
    %1444 = vmatmul.f32.gmra.mxu0 %v1377
    %v1445 = vpop.f32.mrf.mxu0
    %v1446 = vadd.f32 0.0, %v1445
    %1447 = vmatmul.f32.gmra.mxu0 %v1380
    %v1448 = vpop.f32.mrf.mxu0
    %v1449 = vadd.f32 0.0, %v1448
    %1450 = vdwg.mxu0
    %v1451 = vadd.f32 %v1370, %v1400
    %v1452 = vadd.f32 %v1371, %v1423
    %v1453 = vadd.f32 %v1373, %v1403
    %v1454 = vadd.f32 %v1374, %v1426
    %v1455 = vxor.u32 %v1451, 2147483648
    %v1456 = vxor.u32 %v1452, 2147483648
    %v1457 = vxor.u32 %v1453, 2147483648
    %v1458 = vxor.u32 %v1454, 2147483648
    %v1459 = vmul.f32 %v1455, 1.442695
    %v1460 = vpow.pop %v1459
    %v1461 = vmul.f32 %v1456, 1.442695
    %v1462 = vpow.pop %v1461
    %v1463 = vmul.f32 %v1457, 1.442695
    %v1464 = vpow.pop %v1463
    %v1465 = vmul.f32 %v1458, 1.442695
    %v1466 = vpow.pop %v1465
    %v1467 = vadd.f32 %v1460, 1.0
    %v1468 = vadd.f32 %v1462, 1.0
    %v1469 = vadd.f32 %v1464, 1.0
    %v1470 = vadd.f32 %v1466, 1.0
    %v1471 = vrcp.pop %v1467
    %v1472 = vmul.f32 %v1467, %v1471
    %v1473 = vsub.f32 1.0, %v1472
    %v1474 = vmul.f32 %v1471, %v1473
    %v1475 = vadd.f32 %v1471, %v1474
    %vm1476 = vweird.f32 %v1467
    %vm1477 = vweird.f32 %v1471
    %vm1478 = vmor %vm1476, %vm1477
    %v1479 = vsel %vm1478, %v1471, %v1475
    %v1480 = vand.u32 2147483647, %v1467
    %vm1481 = vcmp.eq.f32.partialorder %v1480, 8.507059e+37
    %v1482 = vand.u32 %v1467, 2147483648
    %v1483 = vor.u32 1.1754944e-38, %v1482
    %v1484 = vsel %vm1481, %v1483, %v1479
    %v1485 = vmul.f32 1.0, %v1484
    %v1486 = vrcp.pop %v1468
    %v1487 = vmul.f32 %v1468, %v1486
    %v1488 = vsub.f32 1.0, %v1487
    %v1489 = vmul.f32 %v1486, %v1488
    %v1490 = vadd.f32 %v1486, %v1489
    %vm1491 = vweird.f32 %v1468
    %vm1492 = vweird.f32 %v1486
    %vm1493 = vmor %vm1491, %vm1492
    %v1494 = vsel %vm1493, %v1486, %v1490
    %v1495 = vand.u32 2147483647, %v1468
    %vm1496 = vcmp.eq.f32.partialorder %v1495, 8.507059e+37
    %v1497 = vand.u32 %v1468, 2147483648
    %v1498 = vor.u32 1.1754944e-38, %v1497
    %v1499 = vsel %vm1496, %v1498, %v1494
    %v1500 = vmul.f32 1.0, %v1499
    %v1501 = vrcp.pop %v1469
    %v1502 = vmul.f32 %v1469, %v1501
    %v1503 = vsub.f32 1.0, %v1502
    %v1504 = vmul.f32 %v1501, %v1503
    %v1505 = vadd.f32 %v1501, %v1504
    %vm1506 = vweird.f32 %v1469
    %vm1507 = vweird.f32 %v1501
    %vm1508 = vmor %vm1506, %vm1507
    %v1509 = vsel %vm1508, %v1501, %v1505
    %v1510 = vand.u32 2147483647, %v1469
    %vm1511 = vcmp.eq.f32.partialorder %v1510, 8.507059e+37
    %v1512 = vand.u32 %v1469, 2147483648
    %v1513 = vor.u32 1.1754944e-38, %v1512
    %v1514 = vsel %vm1511, %v1513, %v1509
    %v1515 = vmul.f32 1.0, %v1514
    %v1516 = vrcp.pop %v1470
    %v1517 = vmul.f32 %v1470, %v1516
    %v1518 = vsub.f32 1.0, %v1517
    %v1519 = vmul.f32 %v1516, %v1518
    %v1520 = vadd.f32 %v1516, %v1519
    %vm1521 = vweird.f32 %v1470
    %vm1522 = vweird.f32 %v1516
    %vm1523 = vmor %vm1521, %vm1522
    %v1524 = vsel %vm1523, %v1516, %v1520
    %v1525 = vand.u32 2147483647, %v1470
    %vm1526 = vcmp.eq.f32.partialorder %v1525, 8.507059e+37
    %v1527 = vand.u32 %v1470, 2147483648
    %v1528 = vor.u32 1.1754944e-38, %v1527
    %v1529 = vsel %vm1526, %v1528, %v1524
    %v1530 = vmul.f32 1.0, %v1529
    %v1531 = vadd.f32 %v1446, %v475
    %v1532 = vadd.f32 %v1449, %v475
    %v1533 = vmul.f32 %v1485, %v1531
    %v1534 = vmul.f32 %v1515, %v1532
    %v1535 = vadd.f32 %v1372, %v1533
    %v1536 = vadd.f32 %v1375, %v1534
    %v1537 = vtanh.pop %v1535
    %v1538 = vtanh.pop %v1536
    %v1539 = vsub.f32 %v1368, %v1537
    %v1540 = vsub.f32 %v1369, %v1538
    %v1541 = vmul.f32 %v1500, %v1539
    %v1542 = vmul.f32 %v1530, %v1540
    %v1543 = vadd.f32 %v1537, %v1541
    %v1544 = vadd.f32 %v1538, %v1542
    %vm1545 = vcmp.gt.s32.totalorder %v469, 5
    %vm1546 = vcmp.gt.s32.totalorder %v472, 5
    %v1547 = vsel %vm1545, %v1543, %v1368
    %v1548 = vsel %vm1546, %v1544, %v1369
    %v1549 = vld [vmem:[#allocation2 + $0x120] sm:$0xff]
    %v1550 = vld [vmem:[#allocation2 + $0x128] sm:$0xff]
    %v1551 = vld [vmem:[#allocation2 + $0x130] sm:$0xff]
    %v1552 = vld [vmem:[#allocation2 + $0x138] sm:$0xff]
    %v1553 = vld [vmem:[#allocation2 + $0x140] sm:$0xff]
    %v1554 = vld [vmem:[#allocation2 + $0x148] sm:$0xff]
    %v1556 = vsel %vm483, %v1547, 0
    %v1559 = vsel %vm483, %v1548, 0
    %1561 = vmatpush.msra.mxu0 0.0
    %1562 = vmatpush.msra.mxu0 0.0
    %1563 = vmatpush.msra.mxu0 0.0
    %1564 = vmatpush.msra.mxu0 0.0
    %1565 = vmatpush.msra.mxu0 0.0
    %1566 = vmatpush.msra.mxu0 0.0
    %1567 = vmatpush.msra.mxu0 0.0
    %1568 = vmatpush.msra.mxu0 0.0
    %1569 = vmatpush.msra.mxu0 0.0
    %1570 = vmatpush.msra.mxu0 0.0
    %1571 = vmatpush.msra.mxu0 0.0
    %1572 = vmatpush.msra.mxu0 0.0
    %1573 = vmatpush.msra.mxu0 %v462
    %1574 = vmatpush.msra.mxu0 %v459
    %1575 = vmatpush.msra.mxu0 %v456
    %1576 = vmatpush.msra.mxu0 %v453
    %1577 = vmatmul.f32.gmra.mxu0 %v1556
    %v1578 = vpop.f32.mrf.mxu0
    %v1579 = vadd.f32 0.0, %v1578
    %1580 = vmatmul.f32.gmra.mxu0 %v1559
    %v1581 = vpop.f32.mrf.mxu0
    %v1582 = vadd.f32 0.0, %v1581
    %1583 = vdwg.mxu0
    %1584 = vmatpush.msra.mxu0 0.0
    %1585 = vmatpush.msra.mxu0 0.0
    %1586 = vmatpush.msra.mxu0 0.0
    %1587 = vmatpush.msra.mxu0 0.0
    %1588 = vmatpush.msra.mxu0 0.0
    %1589 = vmatpush.msra.mxu0 0.0
    %1590 = vmatpush.msra.mxu0 0.0
    %1591 = vmatpush.msra.mxu0 0.0
    %1592 = vmatpush.msra.mxu0 0.0
    %1593 = vmatpush.msra.mxu0 0.0
    %1594 = vmatpush.msra.mxu0 0.0
    %1595 = vmatpush.msra.mxu0 0.0
    %1596 = vmatpush.msra.mxu0 %v463
    %1597 = vmatpush.msra.mxu0 %v460
    %1598 = vmatpush.msra.mxu0 %v457
    %1599 = vmatpush.msra.mxu0 %v454
    %1600 = vmatmul.f32.gmra.mxu0 %v1556
    %v1601 = vpop.f32.mrf.mxu0
    %v1602 = vadd.f32 0.0, %v1601
    %1603 = vmatmul.f32.gmra.mxu0 %v1559
    %v1604 = vpop.f32.mrf.mxu0
    %v1605 = vadd.f32 0.0, %v1604
    %1606 = vdwg.mxu0
    %1607 = vmatpush.msra.mxu0 0.0
    %1608 = vmatpush.msra.mxu0 0.0
    %1609 = vmatpush.msra.mxu0 0.0
    %1610 = vmatpush.msra.mxu0 0.0
    %1611 = vmatpush.msra.mxu0 0.0
    %1612 = vmatpush.msra.mxu0 0.0
    %1613 = vmatpush.msra.mxu0 0.0
    %1614 = vmatpush.msra.mxu0 0.0
    %1615 = vmatpush.msra.mxu0 0.0
    %1616 = vmatpush.msra.mxu0 0.0
    %1617 = vmatpush.msra.mxu0 0.0
    %1618 = vmatpush.msra.mxu0 0.0
    %1619 = vmatpush.msra.mxu0 %v464
    %1620 = vmatpush.msra.mxu0 %v461
    %1621 = vmatpush.msra.mxu0 %v458
    %1622 = vmatpush.msra.mxu0 %v455
    %1623 = vmatmul.f32.gmra.mxu0 %v1556
    %v1624 = vpop.f32.mrf.mxu0
    %v1625 = vadd.f32 0.0, %v1624
    %1626 = vmatmul.f32.gmra.mxu0 %v1559
    %v1627 = vpop.f32.mrf.mxu0
    %v1628 = vadd.f32 0.0, %v1627
    %1629 = vdwg.mxu0
    %v1630 = vadd.f32 %v1549, %v1579
    %v1631 = vadd.f32 %v1550, %v1602
    %v1632 = vadd.f32 %v1552, %v1582
    %v1633 = vadd.f32 %v1553, %v1605
    %v1634 = vxor.u32 %v1630, 2147483648
    %v1635 = vxor.u32 %v1631, 2147483648
    %v1636 = vxor.u32 %v1632, 2147483648
    %v1637 = vxor.u32 %v1633, 2147483648
    %v1638 = vmul.f32 %v1634, 1.442695
    %v1639 = vpow.pop %v1638
    %v1640 = vmul.f32 %v1635, 1.442695
    %v1641 = vpow.pop %v1640
    %v1642 = vmul.f32 %v1636, 1.442695
    %v1643 = vpow.pop %v1642
    %v1644 = vmul.f32 %v1637, 1.442695
    %v1645 = vpow.pop %v1644
    %v1646 = vadd.f32 %v1639, 1.0
    %v1647 = vadd.f32 %v1641, 1.0
    %v1648 = vadd.f32 %v1643, 1.0
    %v1649 = vadd.f32 %v1645, 1.0
    %v1650 = vrcp.pop %v1646
    %v1651 = vmul.f32 %v1646, %v1650
    %v1652 = vsub.f32 1.0, %v1651
    %v1653 = vmul.f32 %v1650, %v1652
    %v1654 = vadd.f32 %v1650, %v1653
    %vm1655 = vweird.f32 %v1646
    %vm1656 = vweird.f32 %v1650
    %vm1657 = vmor %vm1655, %vm1656
    %v1658 = vsel %vm1657, %v1650, %v1654
    %v1659 = vand.u32 2147483647, %v1646
    %vm1660 = vcmp.eq.f32.partialorder %v1659, 8.507059e+37
    %v1661 = vand.u32 %v1646, 2147483648
    %v1662 = vor.u32 1.1754944e-38, %v1661
    %v1663 = vsel %vm1660, %v1662, %v1658
    %v1664 = vmul.f32 1.0, %v1663
    %v1665 = vrcp.pop %v1647
    %v1666 = vmul.f32 %v1647, %v1665
    %v1667 = vsub.f32 1.0, %v1666
    %v1668 = vmul.f32 %v1665, %v1667
    %v1669 = vadd.f32 %v1665, %v1668
    %vm1670 = vweird.f32 %v1647
    %vm1671 = vweird.f32 %v1665
    %vm1672 = vmor %vm1670, %vm1671
    %v1673 = vsel %vm1672, %v1665, %v1669
    %v1674 = vand.u32 2147483647, %v1647
    %vm1675 = vcmp.eq.f32.partialorder %v1674, 8.507059e+37
    %v1676 = vand.u32 %v1647, 2147483648
    %v1677 = vor.u32 1.1754944e-38, %v1676
    %v1678 = vsel %vm1675, %v1677, %v1673
    %v1679 = vmul.f32 1.0, %v1678
    %v1680 = vrcp.pop %v1648
    %v1681 = vmul.f32 %v1648, %v1680
    %v1682 = vsub.f32 1.0, %v1681
    %v1683 = vmul.f32 %v1680, %v1682
    %v1684 = vadd.f32 %v1680, %v1683
    %vm1685 = vweird.f32 %v1648
    %vm1686 = vweird.f32 %v1680
    %vm1687 = vmor %vm1685, %vm1686
    %v1688 = vsel %vm1687, %v1680, %v1684
    %v1689 = vand.u32 2147483647, %v1648
    %vm1690 = vcmp.eq.f32.partialorder %v1689, 8.507059e+37
    %v1691 = vand.u32 %v1648, 2147483648
    %v1692 = vor.u32 1.1754944e-38, %v1691
    %v1693 = vsel %vm1690, %v1692, %v1688
    %v1694 = vmul.f32 1.0, %v1693
    %v1695 = vrcp.pop %v1649
    %v1696 = vmul.f32 %v1649, %v1695
    %v1697 = vsub.f32 1.0, %v1696
    %v1698 = vmul.f32 %v1695, %v1697
    %v1699 = vadd.f32 %v1695, %v1698
    %vm1700 = vweird.f32 %v1649
    %vm1701 = vweird.f32 %v1695
    %vm1702 = vmor %vm1700, %vm1701
    %v1703 = vsel %vm1702, %v1695, %v1699
    %v1704 = vand.u32 2147483647, %v1649
    %vm1705 = vcmp.eq.f32.partialorder %v1704, 8.507059e+37
    %v1706 = vand.u32 %v1649, 2147483648
    %v1707 = vor.u32 1.1754944e-38, %v1706
    %v1708 = vsel %vm1705, %v1707, %v1703
    %v1709 = vmul.f32 1.0, %v1708
    %v1710 = vadd.f32 %v1625, %v475
    %v1711 = vadd.f32 %v1628, %v475
    %v1712 = vmul.f32 %v1664, %v1710
    %v1713 = vmul.f32 %v1694, %v1711
    %v1714 = vadd.f32 %v1551, %v1712
    %v1715 = vadd.f32 %v1554, %v1713
    %v1716 = vtanh.pop %v1714
    %v1717 = vtanh.pop %v1715
    %v1718 = vsub.f32 %v1547, %v1716
    %v1719 = vsub.f32 %v1548, %v1717
    %v1720 = vmul.f32 %v1679, %v1718
    %v1721 = vmul.f32 %v1709, %v1719
    %v1722 = vadd.f32 %v1716, %v1720
    %v1723 = vadd.f32 %v1717, %v1721
    %vm1724 = vcmp.gt.s32.totalorder %v469, 6
    %vm1725 = vcmp.gt.s32.totalorder %v472, 6
    %v1726 = vsel %vm1724, %v1722, %v1547
    %v1727 = vsel %vm1725, %v1723, %v1548
    %v1728 = vld [vmem:[#allocation2 + $0x150] sm:$0xff]
    %v1729 = vld [vmem:[#allocation2 + $0x158] sm:$0xff]
    %v1730 = vld [vmem:[#allocation2 + $0x160] sm:$0xff]
    %v1731 = vld [vmem:[#allocation2 + $0x168] sm:$0xff]
    %v1732 = vld [vmem:[#allocation2 + $0x170] sm:$0xff]
    %v1733 = vld [vmem:[#allocation2 + $0x178] sm:$0xff]
    %v1735 = vsel %vm483, %v1726, 0
    %v1738 = vsel %vm483, %v1727, 0
    %1740 = vmatpush.msra.mxu0 0.0
    %1741 = vmatpush.msra.mxu0 0.0
    %1742 = vmatpush.msra.mxu0 0.0
    %1743 = vmatpush.msra.mxu0 0.0
    %1744 = vmatpush.msra.mxu0 0.0
    %1745 = vmatpush.msra.mxu0 0.0
    %1746 = vmatpush.msra.mxu0 0.0
    %1747 = vmatpush.msra.mxu0 0.0
    %1748 = vmatpush.msra.mxu0 0.0
    %1749 = vmatpush.msra.mxu0 0.0
    %1750 = vmatpush.msra.mxu0 0.0
    %1751 = vmatpush.msra.mxu0 0.0
    %1752 = vmatpush.msra.mxu0 %v462
    %1753 = vmatpush.msra.mxu0 %v459
    %1754 = vmatpush.msra.mxu0 %v456
    %1755 = vmatpush.msra.mxu0 %v453
    %1756 = vmatmul.f32.gmra.mxu0 %v1735
    %v1757 = vpop.f32.mrf.mxu0
    %v1758 = vadd.f32 0.0, %v1757
    %1759 = vmatmul.f32.gmra.mxu0 %v1738
    %v1760 = vpop.f32.mrf.mxu0
    %v1761 = vadd.f32 0.0, %v1760
    %1762 = vdwg.mxu0
    %1763 = vmatpush.msra.mxu0 0.0
    %1764 = vmatpush.msra.mxu0 0.0
    %1765 = vmatpush.msra.mxu0 0.0
    %1766 = vmatpush.msra.mxu0 0.0
    %1767 = vmatpush.msra.mxu0 0.0
    %1768 = vmatpush.msra.mxu0 0.0
    %1769 = vmatpush.msra.mxu0 0.0
    %1770 = vmatpush.msra.mxu0 0.0
    %1771 = vmatpush.msra.mxu0 0.0
    %1772 = vmatpush.msra.mxu0 0.0
    %1773 = vmatpush.msra.mxu0 0.0
    %1774 = vmatpush.msra.mxu0 0.0
    %1775 = vmatpush.msra.mxu0 %v463
    %1776 = vmatpush.msra.mxu0 %v460
    %1777 = vmatpush.msra.mxu0 %v457
    %1778 = vmatpush.msra.mxu0 %v454
    %1779 = vmatmul.f32.gmra.mxu0 %v1735
    %v1780 = vpop.f32.mrf.mxu0
    %v1781 = vadd.f32 0.0, %v1780
    %1782 = vmatmul.f32.gmra.mxu0 %v1738
    %v1783 = vpop.f32.mrf.mxu0
    %v1784 = vadd.f32 0.0, %v1783
    %1785 = vdwg.mxu0
    %1786 = vmatpush.msra.mxu0 0.0
    %1787 = vmatpush.msra.mxu0 0.0
    %1788 = vmatpush.msra.mxu0 0.0
    %1789 = vmatpush.msra.mxu0 0.0
    %1790 = vmatpush.msra.mxu0 0.0
    %1791 = vmatpush.msra.mxu0 0.0
    %1792 = vmatpush.msra.mxu0 0.0
    %1793 = vmatpush.msra.mxu0 0.0
    %1794 = vmatpush.msra.mxu0 0.0
    %1795 = vmatpush.msra.mxu0 0.0
    %1796 = vmatpush.msra.mxu0 0.0
    %1797 = vmatpush.msra.mxu0 0.0
    %1798 = vmatpush.msra.mxu0 %v464
    %1799 = vmatpush.msra.mxu0 %v461
    %1800 = vmatpush.msra.mxu0 %v458
    %1801 = vmatpush.msra.mxu0 %v455
    %1802 = vmatmul.f32.gmra.mxu0 %v1735
    %v1803 = vpop.f32.mrf.mxu0
    %v1804 = vadd.f32 0.0, %v1803
    %1805 = vmatmul.f32.gmra.mxu0 %v1738
    %v1806 = vpop.f32.mrf.mxu0
    %v1807 = vadd.f32 0.0, %v1806
    %1808 = vdwg.mxu0
    %v1809 = vadd.f32 %v1728, %v1758
    %v1810 = vadd.f32 %v1729, %v1781
    %v1811 = vadd.f32 %v1731, %v1761
    %v1812 = vadd.f32 %v1732, %v1784
    %v1813 = vxor.u32 %v1809, 2147483648
    %v1814 = vxor.u32 %v1810, 2147483648
    %v1815 = vxor.u32 %v1811, 2147483648
    %v1816 = vxor.u32 %v1812, 2147483648
    %v1817 = vmul.f32 %v1813, 1.442695
    %v1818 = vpow.pop %v1817
    %v1819 = vmul.f32 %v1814, 1.442695
    %v1820 = vpow.pop %v1819
    %v1821 = vmul.f32 %v1815, 1.442695
    %v1822 = vpow.pop %v1821
    %v1823 = vmul.f32 %v1816, 1.442695
    %v1824 = vpow.pop %v1823
    %v1825 = vadd.f32 %v1818, 1.0
    %v1826 = vadd.f32 %v1820, 1.0
    %v1827 = vadd.f32 %v1822, 1.0
    %v1828 = vadd.f32 %v1824, 1.0
    %v1829 = vrcp.pop %v1825
    %v1830 = vmul.f32 %v1825, %v1829
    %v1831 = vsub.f32 1.0, %v1830
    %v1832 = vmul.f32 %v1829, %v1831
    %v1833 = vadd.f32 %v1829, %v1832
    %vm1834 = vweird.f32 %v1825
    %vm1835 = vweird.f32 %v1829
    %vm1836 = vmor %vm1834, %vm1835
    %v1837 = vsel %vm1836, %v1829, %v1833
    %v1838 = vand.u32 2147483647, %v1825
    %vm1839 = vcmp.eq.f32.partialorder %v1838, 8.507059e+37
    %v1840 = vand.u32 %v1825, 2147483648
    %v1841 = vor.u32 1.1754944e-38, %v1840
    %v1842 = vsel %vm1839, %v1841, %v1837
    %v1843 = vmul.f32 1.0, %v1842
    %v1844 = vrcp.pop %v1826
    %v1845 = vmul.f32 %v1826, %v1844
    %v1846 = vsub.f32 1.0, %v1845
    %v1847 = vmul.f32 %v1844, %v1846
    %v1848 = vadd.f32 %v1844, %v1847
    %vm1849 = vweird.f32 %v1826
    %vm1850 = vweird.f32 %v1844
    %vm1851 = vmor %vm1849, %vm1850
    %v1852 = vsel %vm1851, %v1844, %v1848
    %v1853 = vand.u32 2147483647, %v1826
    %vm1854 = vcmp.eq.f32.partialorder %v1853, 8.507059e+37
    %v1855 = vand.u32 %v1826, 2147483648
    %v1856 = vor.u32 1.1754944e-38, %v1855
    %v1857 = vsel %vm1854, %v1856, %v1852
    %v1858 = vmul.f32 1.0, %v1857
    %v1859 = vrcp.pop %v1827
    %v1860 = vmul.f32 %v1827, %v1859
    %v1861 = vsub.f32 1.0, %v1860
    %v1862 = vmul.f32 %v1859, %v1861
    %v1863 = vadd.f32 %v1859, %v1862
    %vm1864 = vweird.f32 %v1827
    %vm1865 = vweird.f32 %v1859
    %vm1866 = vmor %vm1864, %vm1865
    %v1867 = vsel %vm1866, %v1859, %v1863
    %v1868 = vand.u32 2147483647, %v1827
    %vm1869 = vcmp.eq.f32.partialorder %v1868, 8.507059e+37
    %v1870 = vand.u32 %v1827, 2147483648
    %v1871 = vor.u32 1.1754944e-38, %v1870
    %v1872 = vsel %vm1869, %v1871, %v1867
    %v1873 = vmul.f32 1.0, %v1872
    %v1874 = vrcp.pop %v1828
    %v1875 = vmul.f32 %v1828, %v1874
    %v1876 = vsub.f32 1.0, %v1875
    %v1877 = vmul.f32 %v1874, %v1876
    %v1878 = vadd.f32 %v1874, %v1877
    %vm1879 = vweird.f32 %v1828
    %vm1880 = vweird.f32 %v1874
    %vm1881 = vmor %vm1879, %vm1880
    %v1882 = vsel %vm1881, %v1874, %v1878
    %v1883 = vand.u32 2147483647, %v1828
    %vm1884 = vcmp.eq.f32.partialorder %v1883, 8.507059e+37
    %v1885 = vand.u32 %v1828, 2147483648
    %v1886 = vor.u32 1.1754944e-38, %v1885
    %v1887 = vsel %vm1884, %v1886, %v1882
    %v1888 = vmul.f32 1.0, %v1887
    %v1889 = vadd.f32 %v1804, %v475
    %v1890 = vadd.f32 %v1807, %v475
    %v1891 = vmul.f32 %v1843, %v1889
    %v1892 = vmul.f32 %v1873, %v1890
    %v1893 = vadd.f32 %v1730, %v1891
    %v1894 = vadd.f32 %v1733, %v1892
    %v1895 = vtanh.pop %v1893
    %v1896 = vtanh.pop %v1894
    %v1897 = vsub.f32 %v1726, %v1895
    %v1898 = vsub.f32 %v1727, %v1896
    %v1899 = vmul.f32 %v1858, %v1897
    %v1900 = vmul.f32 %v1888, %v1898
    %v1901 = vadd.f32 %v1895, %v1899
    %v1902 = vadd.f32 %v1896, %v1900
    %vm1903 = vcmp.gt.s32.totalorder %v469, 7
    %vm1904 = vcmp.gt.s32.totalorder %v472, 7
    %v1905 = vsel %vm1903, %v1901, %v1726
    %v1906 = vsel %vm1904, %v1902, %v1727
    %v1907 = vld [vmem:[%s5] sm:$0xff]
    %v1908 = vld [vmem:[%s5 + $0x8] sm:$0xff]
    %v1909 = vld [vmem:[%s5 + $0x10] sm:$0xff]
    %v1910 = vld [vmem:[%s5 + $0x18] sm:$0xff]
    %s1911 = scalar_lea.vmem %s5, 32
    %v1912 = vld [vmem:[%s1911] sm:$0xff]
    %v1913 = vld [vmem:[%s1911 + $0x8] sm:$0xff]
    %v1914 = vld [vmem:[%s1911 + $0x10] sm:$0xff]
    %v1915 = vld [vmem:[%s1911 + $0x18] sm:$0xff]
    %v1917 = vsel %vm483, %v1906, 0
    %1919 = vmatpush.msra.mxu0 0.0
    %1920 = vmatpush.msra.mxu0 0.0
    %1921 = vmatpush.msra.mxu0 0.0
    %1922 = vmatpush.msra.mxu0 0.0
    %1923 = vmatpush.msra.mxu0 0.0
    %1924 = vmatpush.msra.mxu0 0.0
    %1925 = vmatpush.msra.mxu0 0.0
    %1926 = vmatpush.msra.mxu0 0.0
    %1927 = vmatpush.msra.mxu0 0.0
    %1928 = vmatpush.msra.mxu0 0.0
    %1929 = vmatpush.msra.mxu0 0.0
    %1930 = vmatpush.msra.mxu0 0.0
    %1931 = vmatpush.msra.mxu0 %v1915
    %1932 = vmatpush.msra.mxu0 %v1914
    %1933 = vmatpush.msra.mxu0 %v1913
    %1934 = vmatpush.msra.mxu0 %v1912
    %1935 = vmatmul.f32.gmra.mxu0 %v1917
    %v1936 = vpop.f32.mrf.mxu0
    %v1937 = vadd.f32 0.0, %v1936
    %1938 = vdwg.mxu0
    %v1940 = vsel %vm483, %v1905, 0
    %1942 = vmatpush.msra.mxu0 0.0
    %1943 = vmatpush.msra.mxu0 0.0
    %1944 = vmatpush.msra.mxu0 0.0
    %1945 = vmatpush.msra.mxu0 0.0
    %1946 = vmatpush.msra.mxu0 0.0
    %1947 = vmatpush.msra.mxu0 0.0
    %1948 = vmatpush.msra.mxu0 0.0
    %1949 = vmatpush.msra.mxu0 0.0
    %1950 = vmatpush.msra.mxu0 0.0
    %1951 = vmatpush.msra.mxu0 0.0
    %1952 = vmatpush.msra.mxu0 0.0
    %1953 = vmatpush.msra.mxu0 0.0
    %1954 = vmatpush.msra.mxu0 %v1910
    %1955 = vmatpush.msra.mxu0 %v1909
    %1956 = vmatpush.msra.mxu0 %v1908
    %1957 = vmatpush.msra.mxu0 %v1907
    %1958 = vmatmul.f32.gmra.mxu0 %v1940
    %v1959 = vpop.f32.mrf.mxu0
    %v1960 = vadd.f32 %v1937, %v1959
    %1961 = vdwg.mxu0
    %v1962 = vld [vmem:[%s6] sm:$0x1]
    %v1964 = vperm.slane %v1962, 0
    %v1966 = vadd.f32 %v1960, %v1964
    %v1967 = vtanh.pop %v1966
    %v1968 = vld [vmem:[%s7] sm:$0xff]
    %v1969 = vld [vmem:[%s7 + $0x8] sm:$0xff]
    %v1970 = vld [vmem:[%s7 + $0x10] sm:$0xff]
    %v1971 = vld [vmem:[%s7 + $0x18] sm:$0xff]
    %v1972 = vld [vmem:[%s7 + $0x20] sm:$0xff]
    %v1973 = vld [vmem:[%s7 + $0x28] sm:$0xff]
    %v1974 = vld [vmem:[%s7 + $0x30] sm:$0xff]
    %v1975 = vld [vmem:[%s7 + $0x38] sm:$0xff]
    %v1976 = vld [vmem:[%s8] sm:$0x1]
    %v1978 = vperm.slane %v1976, 0
    %vm1980 = vcmask 523264
    %v1982 = vsel %vm1980, %v1967, 0
    %1984 = vmatpush.msra.mxu0 0.0
    %1985 = vmatpush.msra.mxu0 0.0
    %1986 = vmatpush.msra.mxu0 0.0
    %1987 = vmatpush.msra.mxu0 0.0
    %1988 = vmatpush.msra.mxu0 0.0
    %1989 = vmatpush.msra.mxu0 0.0
    %1990 = vmatpush.msra.mxu0 0.0
    %1991 = vmatpush.msra.mxu0 0.0
    %1992 = vmatpush.msra.mxu0 %v1975
    %1993 = vmatpush.msra.mxu0 %v1974
    %1994 = vmatpush.msra.mxu0 %v1973
    %1995 = vmatpush.msra.mxu0 %v1972
    %1996 = vmatpush.msra.mxu0 %v1971
    %1997 = vmatpush.msra.mxu0 %v1970
    %1998 = vmatpush.msra.mxu0 %v1969
    %1999 = vmatpush.msra.mxu0 %v1968
    %2000 = vmatmul.f32.gmra.mxu0 %v1982
    %v2001 = vpop.f32.mrf.mxu0
    %v2002 = vadd.f32 %v1978, %v2001
    %2003 = vdwg.mxu0
    %vm2004 = vcmask 23552
    %2005 = vst.msk [vmem:[%s9] sm:$0xff] %vm2004, %v2002
    // Predicated region
    $region42: #{nli_forward.1} parent=1 // pred_check
      _
    $region43: #{nli_forward.1} parent=1 // pred_check_branch
      %2007 = sbr.rel (0) target = $region45
    $region44: #{nli_forward.1} parent=1 // pred_region
      _
    $region45: #{nli_forward.1} parent=1 // pred_fallthru
      _
    // Predicated region
    $region46: #{nli_forward.1} parent=1 // pred_check
      _
    $region47: #{nli_forward.1} parent=1 // pred_check_branch
      %2009 = sbr.rel (0) target = $region49
    $region48: #{nli_forward.1} parent=1 // pred_region
      _
    $region49: #{nli_forward.1} parent=1 // pred_fallthru
      _
    %2010 = vsyncpa [#allocation4], 1

</llo_original>
